<compile_context>
chip_gen: v5e
topology: v5e:2x2
jax: 0.10.0
libtpu: 0.0.40
codegen_flags: <defaults>
</compile_context>

<pallas_src>
import functools

import jax
import jax.numpy as jnp
from jax.experimental import pallas as pl
from jax.experimental.pallas import tpu as pltpu


_FUSE_LNEG_MAX_K = 4096   # fuse the queue matmul into the branch kernel when small


# ----------------------------- Pallas kernels ------------------------------

def _branch_body(x_ref, wb_ref, bb_ref, w1_ref, b1_ref, w2_ref, b2_ref):
    """Shared per-branch compute:
       feats = x @ Wb + bb                              (synthetic backbone)
       z     = normalize(relu(feats @ W1 + b1) @ W2 + b2)   (encoder_*_fc head)
    Returns (feats_bf16, normalized z in f32)."""
    feats = jnp.dot(x_ref[...], wb_ref[...], preferred_element_type=jnp.float32)
    feats = feats + bb_ref[...]
    feats_bf = feats.astype(jnp.bfloat16)

    h = jnp.dot(feats_bf, w1_ref[...], preferred_element_type=jnp.float32)
    h = jnp.maximum(h + b1_ref[...], 0.0)
    z = jnp.dot(h.astype(jnp.bfloat16), w2_ref[...],
                preferred_element_type=jnp.float32)
    z = z + b2_ref[...]
    # F.normalize(z, dim=1): z / max(||z||, 1e-12) == z * rsqrt(max(||z||^2, 1e-24))
    ssq = jnp.sum(z * z, axis=1, keepdims=True)
    return feats_bf, z * jax.lax.rsqrt(jnp.maximum(ssq, 1e-24))


def _branch_kernel(x_ref, wb_ref, bb_ref, w1_ref, b1_ref, w2_ref, b2_ref,
                   wc_ref, bc_ref, z_ref, cls_ref):
    feats_bf, zn = _branch_body(x_ref, wb_ref, bb_ref,
                                w1_ref, b1_ref, w2_ref, b2_ref)
    z_ref[...] = zn

    # classifier(feats.detach()) is only consumed for the query branch (0);
    # skip the widest matmul entirely on the key branch (its cls block is
    # garbage in HBM and never read).
    @pl.when(pl.program_id(0) == 0)
    def _():
        cls = jnp.dot(feats_bf, wc_ref[...], preferred_element_type=jnp.float32)
        cls_ref[...] = cls + bc_ref[...]


def _branch_kernel_fused(x_ref, wb_ref, bb_ref, w1_ref, b1_ref, w2_ref, b2_ref,
                         wc_ref, bc_ref, queue_ref,
                         z_ref, cls_ref, lneg_ref, *, inv_t):
    feats_bf, zn = _branch_body(x_ref, wb_ref, bb_ref,
                                w1_ref, b1_ref, w2_ref, b2_ref)
    z_ref[...] = zn

    @pl.when(pl.program_id(0) == 0)
    def _():
        cls = jnp.dot(feats_bf, wc_ref[...], preferred_element_type=jnp.float32)
        cls_ref[...] = cls + bc_ref[...]
        # l_neg = (q / T) @ queue; queue already bf16 in HBM (no in-kernel cast).
        q = (zn * inv_t).astype(jnp.bfloat16)
        lneg_ref[...] = jnp.dot(q, queue_ref[...],
                                preferred_element_type=jnp.float32)


def encoder_branches(x2, wb2, bb2, w12, b12, w22, b22, wc, bc, queue, inv_t):
    """Query (branch 0) and key (branch 1) pipelines as one pallas_call.

    x2 : (2, B, Fin) bf16 stacked flattened images (query, shuffled key)
    w*2: (2, ...) bf16 stacked per-branch weights; b*2: (2, 1, .) f32 biases.
    wc, bc: shared classifier (bf16 weights lane-padded, f32 bias).
    queue: (D, K) bf16 or None.  If given (small K), l_neg is fused on branch 0
    and (z2, cls2, lneg2) is returned; otherwise (z2, cls2).
    """
    two, B, Fin = x2.shape
    Dm = wb2.shape[2]
    D = w22.shape[2]
    Ncp = wc.shape[1]

    def branch(*dims):   # per-branch block, leading axis squeezed
        return pl.BlockSpec((None,) + dims, lambda b: (b,) + (0,) * len(dims))

    def shared(*dims):   # same block for both branches
        return pl.BlockSpec(dims, lambda b: (0,) * len(dims))

    in_specs = [
        branch(B, Fin),
        branch(Fin, Dm), branch(1, Dm),
        branch(Dm, Dm), branch(1, Dm),
        branch(Dm, D), branch(1, D),
        shared(Dm, Ncp), shared(1, Ncp),
    ]
    out_specs = [branch(B, D), branch(B, Ncp)]
    out_shape = [jax.ShapeDtypeStruct((two, B, D), jnp.float32),
                 jax.ShapeDtypeStruct((two, B, Ncp), jnp.float32)]
    args = (x2, wb2, bb2, w12, b12, w22, b22, wc, bc)

    if queue is None:
        kernel = _branch_kernel
    else:
        K = queue.shape[1]
        kernel = functools.partial(_branch_kernel_fused, inv_t=inv_t)
        in_specs.append(shared(D, K))
        out_specs.append(branch(B, K))
        out_shape.append(jax.ShapeDtypeStruct((two, B, K), jnp.float32))
        args = args + (queue,)

    return pl.pallas_call(
        kernel,
        grid=(two,),
        out_shape=tuple(out_shape),
        in_specs=in_specs,
        out_specs=tuple(out_specs),
        compiler_params=pltpu.CompilerParams(
            dimension_semantics=("parallel",)),   # query/key -> v7x's 2 TCs
    )(*args)


def _lneg_kernel(q_ref, queue_ref, o_ref, *, inv_t):
    # l_neg tile = (q / T) @ queue[:, tile]; q scaled once (B*D mults, not B*K).
    q = (q_ref[...] * inv_t).astype(jnp.bfloat16)
    o_ref[...] = jnp.dot(q, queue_ref[...], preferred_element_type=jnp.float32)


def _pick_tile_k(K, max_tile=8192):
    """Lane-dense K tile: biggest divisor of K <= max_tile that is a multiple
    of 128, while keeping >=2 grid steps so the 'parallel' axis can shard
    across both v7x TensorCores."""
    tile = min(max_tile, K)
    if K >= 256:
        tile = min(tile, K // 2)
    tile = max(128, (tile // 128) * 128)
    while tile > 128 and K % tile:
        tile -= 128
    assert tile >= 128 and K % tile == 0, "queue size must be a multiple of 128"
    return tile


def moco_l_neg(q, queue, temperature):
    """l_neg = einsum('nc,ck->nk', q, queue) / T, tiled over K (large-K path)."""
    B, D = q.shape
    K = queue.shape[1]
    tile_k = _pick_tile_k(K)
    return pl.pallas_call(
        functools.partial(_lneg_kernel, inv_t=1.0 / temperature),
        grid=(K // tile_k,),
        out_shape=jax.ShapeDtypeStruct((B, K), jnp.float32),
        in_specs=[
            pl.BlockSpec((B, D), lambda j: (0, 0)),
            pl.BlockSpec((D, tile_k), lambda j: (0, j)),
        ],
        out_specs=pl.BlockSpec((B, tile_k), lambda j: (0, j)),
        compiler_params=pltpu.CompilerParams(
            dimension_semantics=("parallel",),
            # double-buffered (D, tile_k) bf16 queue tiles + (B, tile_k) f32 out
            # need only a few MiB; keep the cap small for v7x's 64 MiB VMEM.
            vmem_limit_bytes=16 * 1024 * 1024),
    )(q, queue)


# ------------------------------- MoCo model ---------------------------------

def init_params(key, in_dim, dim_mlp, dim, num_classes, K):
    ks = jax.random.split(key, 8)
    scale = 0.02
    bf = jnp.bfloat16

    def rnd(k, shape):
        return scale * jax.random.normal(k, shape, dtype=jnp.float32)

    def stacked(p):
        # param_k.data.copy_(param_q.data): key branch starts as a copy of the
        # query branch, materialized as its own slice (no buffer aliasing).
        return jnp.stack([p, p], axis=0)

    params_f32 = {
        "wb": stacked(rnd(ks[0], (in_dim, dim_mlp))),   # synthetic backbone (fc=Identity)
        "bb": stacked(rnd(ks[1], (1, dim_mlp))),
        "w1": stacked(rnd(ks[2], (dim_mlp, dim_mlp))),  # encoder_*_fc: Linear
        "b1": stacked(rnd(ks[3], (1, dim_mlp))),
        "w2": stacked(rnd(ks[4], (dim_mlp, dim))),      # original encoder.fc
        "b2": stacked(rnd(ks[5], (1, dim))),
    }
    # bf16 shadow of the MXU weight matrices (biases stay f32).
    weights_bf16 = {n: params_f32[n].astype(bf) for n in ("wb", "w1", "w2")}

    # classifier = Linear(dim_mlp, num_classes); lane-pad to a 128 multiple
    # (pad columns are zero and sliced off in glue), stored bf16 once.
    nc_pad = ((num_classes + 127) // 128) * 128
    wc = rnd(ks[6], (dim_mlp, num_classes))
    classifier = {
        "wc": jnp.pad(wc, ((0, 0), (0, nc_pad - num_classes))).astype(bf),
        "bc": jnp.zeros((1, nc_pad), jnp.float32),
    }

    # queue: randn(dim, K) normalized along dim=0, kept bf16 in HBM.
    queue = jax.random.normal(ks[7], (dim, K), dtype=jnp.float32)
    queue = queue * jax.lax.rsqrt(
        jnp.maximum(jnp.sum(queue * queue, axis=0, keepdims=True), 1e-24))
    queue = queue.astype(bf)
    queue_ptr = jnp.zeros((1,), jnp.int32)
    return params_f32, weights_bf16, classifier, queue, queue_ptr


def forward_mocov2(params_f32, weights_bf16, classifier, queue, queue_ptr,
                   im_q, im_k, shuffle_key, *, m, T, num_classes):
    B = im_q.shape[0]
    D, K = queue.shape
    bf = jnp.bfloat16

    # ---- momentum update of key encoder (torch.no_grad): update the key slice
    # of the donated f32 masters in place, refresh only that slice of the bf16
    # shadow (no per-step stacking / full-weight cast).
    params_f32 = jax.tree_util.tree_map(
        lambda a: a.at[1].set(jax.lax.stop_gradient(a[1] * m + a[0] * (1.0 - m))),
        params_f32)
    weights_bf16 = {n: weights_bf16[n].at[1].set(params_f32[n][1].astype(bf))
                    for n in ("wb", "w1", "w2")}

    # ---- batch shuffle (world_size == 1 -> local permutation) ----
    # TODO(synk): concat_all_gather / DDP broadcast are multi-host collectives;
    # with world_size=1 all_gather is identity and the shuffle is local.
    idx_shuffle = jax.random.permutation(shuffle_key, B)
    idx_unshuffle = jnp.argsort(idx_shuffle)
    im_k_shuf = im_k[idx_shuffle]

    # ---- run query + key branches in one fused kernel launch ----
    x2 = jnp.stack([im_q.reshape(B, -1), im_k_shuf.reshape(B, -1)],
                   axis=0).astype(bf)
    inv_t = 1.0 / T
    fuse_lneg = K <= _FUSE_LNEG_MAX_K          # static (shape-based) decision
    outs = encoder_branches(
        x2,
        weights_bf16["wb"], params_f32["bb"],
        weights_bf16["w1"], params_f32["b1"],
        weights_bf16["w2"], params_f32["b2"],
        classifier["wc"], classifier["bc"],
        queue if fuse_lneg else None, inv_t)
    if fuse_lneg:
        z2, cls2, lneg2 = outs
        l_neg = lneg2[0]
    else:
        z2, cls2 = outs
        l_neg = None

    q = z2[0]                                        # normalized queries
    k = jax.lax.stop_gradient(z2[1][idx_unshuffle])  # unshuffled keys (no_grad)
    classifier_output = cls2[0, :, :num_classes]     # drop lane padding

    # ---- contrastive logits ----
    # l_pos is a lane-sparse (B, 1) column -> plain JAX glue; l_neg is the
    # lane-dense queue matmul (fused at small K, tiled Pallas kernel at large K).
    l_pos = jnp.sum(q * k, axis=1, keepdims=True) * inv_t
    if l_neg is None:
        l_neg = moco_l_neg(q, queue, T)
    logits = jnp.concatenate([l_pos, l_neg], axis=1)
    labels = jnp.zeros((B,), jnp.int32)

    # ---- dequeue and enqueue (in place: queue buffer is donated) ----
    # assumes K % B == 0 (same as the PyTorch assert), ptr stays a multiple of B.
    ptr = queue_ptr[0]
    new_queue = jax.lax.dynamic_update_slice(queue, k.astype(bf).T, (0, ptr))
    new_ptr = jnp.mod(ptr + B, K).reshape(1)

    return (logits, labels, classifier_output,
            params_f32, weights_bf16, new_queue, new_ptr)


# Donate the f32 masters, bf16 shadow, queue and ptr (momentum EMA, shadow
# refresh and enqueue all happen in place).  No donated buffer aliases any
# other argument, which fixes the previous donate-aliasing Execute() failure.
forward_mocov2_jit = jax.jit(
    forward_mocov2,
    static_argnames=("m", "T", "num_classes"),
    donate_argnums=(0, 1, 3, 4),
)


# ---------------------------------- main -------------------------------------

if __name__ == "__main__":
    # Small shapes consistent with the module (lane-aligned where free to choose)
    B, C, H, W = 8, 3, 16, 16          # im_q / im_k : NCHW
    dim_mlp = 128                      # backbone feature dim (128-lane aligned)
    dim = 128                          # MoCo projection dim (default 128)
    K = 256                            # queue size (small toy; K % B == 0)
    num_classes = 1000                 # classifier = Linear(dim_mlp, 1000)
    m, T = 0.999, 0.07
    assert K % B == 0

    root = jax.random.PRNGKey(0)
    k_param, k_imq, k_imk, k_shuf = jax.random.split(root, 4)

    params_f32, weights_bf16, classifier, queue, queue_ptr = init_params(
        k_param, C * H * W, dim_mlp, dim, num_classes, K)

    im_q = jax.random.normal(k_imq, (B, C, H, W), dtype=jnp.float32)
    im_k = jax.random.normal(k_imk, (B, C, H, W), dtype=jnp.float32)

    (logits, labels, classifier_output,
     params_f32, weights_bf16, queue, queue_ptr) = forward_mocov2_jit(
        params_f32, weights_bf16, classifier, queue, queue_ptr,
        im_q, im_k, k_shuf, m=m, T=T, num_classes=num_classes)

    jax.block_until_ready((logits, labels, classifier_output, queue, queue_ptr))

    assert logits.shape == (B, 1 + K)
    assert labels.shape == (B,)
    assert classifier_output.shape == (B, num_classes)
    print("KERNEL_OK")
</pallas_src>

<mosaic_0001>
module attributes {stable_mosaic.version = 11 : i64} {
  func.func @_branch_kernel_fused(%arg0: i32, %arg1: memref<1x8x768xbf16, #tpu.memory_space<vmem>>, %arg2: memref<1x768x128xbf16, #tpu.memory_space<vmem>>, %arg3: memref<1x1x128xf32, #tpu.memory_space<vmem>>, %arg4: memref<1x128x128xbf16, #tpu.memory_space<vmem>>, %arg5: memref<1x1x128xf32, #tpu.memory_space<vmem>>, %arg6: memref<1x128x128xbf16, #tpu.memory_space<vmem>>, %arg7: memref<1x1x128xf32, #tpu.memory_space<vmem>>, %arg8: memref<128x1024xbf16, #tpu.memory_space<vmem>>, %arg9: memref<1x1024xf32, #tpu.memory_space<vmem>>, %arg10: memref<128x256xbf16, #tpu.memory_space<vmem>>, %arg11: memref<1x8x128xf32, #tpu.memory_space<vmem>>, %arg12: memref<1x8x1024xf32, #tpu.memory_space<vmem>>, %arg13: memref<1x8x256xf32, #tpu.memory_space<vmem>>) attributes {dimension_semantics = [#tpu.dimension_semantics<parallel>], iteration_bounds = array<i64: 2>, scalar_prefetch = 0 : i64, scratch_operands = 0 : i64, tpu.core_type = #tpu.core_type<tc>, window_params = [{transform_indices = @transform_0, window_bounds = array<i64: 1, 8, 768>}, {transform_indices = @transform_1, window_bounds = array<i64: 1, 768, 128>}, {transform_indices = @transform_2, window_bounds = array<i64: 1, 1, 128>}, {transform_indices = @transform_3, window_bounds = array<i64: 1, 128, 128>}, {transform_indices = @transform_4, window_bounds = array<i64: 1, 1, 128>}, {transform_indices = @transform_5, window_bounds = array<i64: 1, 128, 128>}, {transform_indices = @transform_6, window_bounds = array<i64: 1, 1, 128>}, {pipeline_mode = #tpu.pipeline_mode<synchronous>, transform_indices = @transform_7, window_bounds = array<i64: 128, 1024>}, {pipeline_mode = #tpu.pipeline_mode<synchronous>, transform_indices = @transform_8, window_bounds = array<i64: 1, 1024>}, {pipeline_mode = #tpu.pipeline_mode<synchronous>, transform_indices = @transform_9, window_bounds = array<i64: 128, 256>}, {transform_indices = @transform_10, window_bounds = array<i64: 1, 8, 128>}, {transform_indices = @transform_11, window_bounds = array<i64: 1, 8, 1024>}, {transform_indices = @transform_12, window_bounds = array<i64: 1, 8, 256>}]} {
    %c0 = arith.constant 0 : index
    %c0_0 = arith.constant 0 : index
    %c0_1 = arith.constant 0 : index
    %0 = vector.load %arg1[%c0, %c0_0, %c0_1] : memref<1x8x768xbf16, #tpu.memory_space<vmem>>, vector<1x8x768xbf16>
    %1 = vector.shape_cast %0 : vector<1x8x768xbf16> to vector<8x768xbf16>
    %c0_2 = arith.constant 0 : index
    %c0_3 = arith.constant 0 : index
    %c0_4 = arith.constant 0 : index
    %2 = vector.load %arg2[%c0_2, %c0_3, %c0_4] : memref<1x768x128xbf16, #tpu.memory_space<vmem>>, vector<1x768x128xbf16>
    %3 = vector.shape_cast %2 : vector<1x768x128xbf16> to vector<768x128xbf16>
    %cst = arith.constant dense<0.000000e+00> : vector<8x128xf32>
    %4 = tpu.matmul %1, %3, %cst {dimension_numbers = #tpu.dot_dimension_numbers<[1], [0], [0], [1], [0, 0, 1, 1], [], []>} : vector<8x768xbf16>, vector<768x128xbf16>, vector<8x128xf32> -> vector<8x128xf32>
    %c0_5 = arith.constant 0 : index
    %c0_6 = arith.constant 0 : index
    %c0_7 = arith.constant 0 : index
    %5 = vector.load %arg3[%c0_5, %c0_6, %c0_7] : memref<1x1x128xf32, #tpu.memory_space<vmem>>, vector<1x1x128xf32>
    %6 = vector.shape_cast %5 : vector<1x1x128xf32> to vector<1x128xf32>
    %7 = vector.broadcast %6 : vector<1x128xf32> to vector<8x128xf32>
    %8 = arith.addf %4, %7 : vector<8x128xf32>
    %9 = arith.truncf %8 : vector<8x128xf32> to vector<8x128xbf16>
    %c0_8 = arith.constant 0 : index
    %c0_9 = arith.constant 0 : index
    %c0_10 = arith.constant 0 : index
    %10 = vector.load %arg4[%c0_8, %c0_9, %c0_10] : memref<1x128x128xbf16, #tpu.memory_space<vmem>>, vector<1x128x128xbf16>
    %11 = vector.shape_cast %10 : vector<1x128x128xbf16> to vector<128x128xbf16>
    %cst_11 = arith.constant dense<0.000000e+00> : vector<8x128xf32>
    %12 = tpu.matmul %9, %11, %cst_11 {dimension_numbers = #tpu.dot_dimension_numbers<[1], [0], [0], [1], [0, 0, 1, 1], [], []>} : vector<8x128xbf16>, vector<128x128xbf16>, vector<8x128xf32> -> vector<8x128xf32>
    %c0_12 = arith.constant 0 : index
    %c0_13 = arith.constant 0 : index
    %c0_14 = arith.constant 0 : index
    %13 = vector.load %arg5[%c0_12, %c0_13, %c0_14] : memref<1x1x128xf32, #tpu.memory_space<vmem>>, vector<1x1x128xf32>
    %14 = vector.shape_cast %13 : vector<1x1x128xf32> to vector<1x128xf32>
    %15 = vector.broadcast %14 : vector<1x128xf32> to vector<8x128xf32>
    %16 = arith.addf %12, %15 : vector<8x128xf32>
    %cst_15 = arith.constant 0.000000e+00 : f32
    %17 = vector.broadcast %cst_15 : f32 to vector<8x128xf32>
    %18 = arith.maximumf %16, %17 : vector<8x128xf32>
    %19 = arith.truncf %18 : vector<8x128xf32> to vector<8x128xbf16>
    %c0_16 = arith.constant 0 : index
    %c0_17 = arith.constant 0 : index
    %c0_18 = arith.constant 0 : index
    %20 = vector.load %arg6[%c0_16, %c0_17, %c0_18] : memref<1x128x128xbf16, #tpu.memory_space<vmem>>, vector<1x128x128xbf16>
    %21 = vector.shape_cast %20 : vector<1x128x128xbf16> to vector<128x128xbf16>
    %cst_19 = arith.constant dense<0.000000e+00> : vector<8x128xf32>
    %22 = tpu.matmul %19, %21, %cst_19 {dimension_numbers = #tpu.dot_dimension_numbers<[1], [0], [0], [1], [0, 0, 1, 1], [], []>} : vector<8x128xbf16>, vector<128x128xbf16>, vector<8x128xf32> -> vector<8x128xf32>
    %c0_20 = arith.constant 0 : index
    %c0_21 = arith.constant 0 : index
    %c0_22 = arith.constant 0 : index
    %23 = vector.load %arg7[%c0_20, %c0_21, %c0_22] : memref<1x1x128xf32, #tpu.memory_space<vmem>>, vector<1x1x128xf32>
    %24 = vector.shape_cast %23 : vector<1x1x128xf32> to vector<1x128xf32>
    %25 = vector.broadcast %24 : vector<1x128xf32> to vector<8x128xf32>
    %26 = arith.addf %22, %25 : vector<8x128xf32>
    %27 = arith.mulf %26, %26 : vector<8x128xf32>
    %cst_23 = arith.constant dense<0.000000e+00> : vector<8xf32>
    %28 = vector.multi_reduction <add>, %27, %cst_23 [1] : vector<8x128xf32> to vector<8xf32>
    %29 = vector.shape_cast %28 : vector<8xf32> to vector<8x1xf32>
    %cst_24 = arith.constant 1.000000e-24 : f32
    %30 = vector.broadcast %cst_24 : f32 to vector<8x1xf32>
    %31 = arith.maximumf %29, %30 : vector<8x1xf32>
    %32 = math.rsqrt %31 : vector<8x1xf32>
    %33 = vector.broadcast %32 : vector<8x1xf32> to vector<8x128xf32>
    %34 = arith.mulf %26, %33 : vector<8x128xf32>
    %c0_25 = arith.constant 0 : index
    %c0_26 = arith.constant 0 : index
    %c0_27 = arith.constant 0 : index
    %35 = vector.load %arg11[%c0_25, %c0_26, %c0_27] : memref<1x8x128xf32, #tpu.memory_space<vmem>>, vector<1x8x128xf32>
    %36 = vector.shape_cast %35 : vector<1x8x128xf32> to vector<8x128xf32>
    %37 = vector.shape_cast %34 : vector<8x128xf32> to vector<1x8x128xf32>
    tpu.vector_store %arg11[%c0_25, %c0_26, %c0_27], %37 {strides = array<i32>} : memref<1x8x128xf32, #tpu.memory_space<vmem>>, vector<1x8x128xf32>,
    %c0_i32 = arith.constant 0 : i32
    %38 = arith.cmpi eq, %arg0, %c0_i32 : i32
    %39 = arith.extui %38 : i1 to i32
    %c0_i32_28 = arith.constant 0 : i32
    %40 = arith.cmpi ne, %39, %c0_i32_28 : i32
    scf.if %40 {
      %c0_29 = arith.constant 0 : index
      %c0_30 = arith.constant 0 : index
      %41 = vector.load %arg8[%c0_29, %c0_30] : memref<128x1024xbf16, #tpu.memory_space<vmem>>, vector<128x1024xbf16>
      %cst_31 = arith.constant dense<0.000000e+00> : vector<8x1024xf32>
      %42 = tpu.matmul %9, %41, %cst_31 {dimension_numbers = #tpu.dot_dimension_numbers<[1], [0], [0], [1], [0, 0, 1, 1], [], []>} : vector<8x128xbf16>, vector<128x1024xbf16>, vector<8x1024xf32> -> vector<8x1024xf32>
      %c0_32 = arith.constant 0 : index
      %c0_33 = arith.constant 0 : index
      %43 = vector.load %arg9[%c0_32, %c0_33] : memref<1x1024xf32, #tpu.memory_space<vmem>>, vector<1x1024xf32>
      %44 = vector.broadcast %43 : vector<1x1024xf32> to vector<8x1024xf32>
      %45 = arith.addf %42, %44 : vector<8x1024xf32>
      %c0_34 = arith.constant 0 : index
      %c0_35 = arith.constant 0 : index
      %c0_36 = arith.constant 0 : index
      %46 = vector.load %arg12[%c0_34, %c0_35, %c0_36] : memref<1x8x1024xf32, #tpu.memory_space<vmem>>, vector<1x8x1024xf32>
      %47 = vector.shape_cast %46 : vector<1x8x1024xf32> to vector<8x1024xf32>
      %48 = vector.shape_cast %45 : vector<8x1024xf32> to vector<1x8x1024xf32>
      tpu.vector_store %arg12[%c0_34, %c0_35, %c0_36], %48 {strides = array<i32>} : memref<1x8x1024xf32, #tpu.memory_space<vmem>>, vector<1x8x1024xf32>,
      %cst_37 = arith.constant 14.2857141 : f32
      %49 = vector.broadcast %cst_37 : f32 to vector<8x128xf32>
      %50 = arith.mulf %34, %49 : vector<8x128xf32>
      %51 = arith.truncf %50 : vector<8x128xf32> to vector<8x128xbf16>
      %c0_38 = arith.constant 0 : index
      %c0_39 = arith.constant 0 : index
      %52 = vector.load %arg10[%c0_38, %c0_39] : memref<128x256xbf16, #tpu.memory_space<vmem>>, vector<128x256xbf16>
      %cst_40 = arith.constant dense<0.000000e+00> : vector<8x256xf32>
      %53 = tpu.matmul %51, %52, %cst_40 {dimension_numbers = #tpu.dot_dimension_numbers<[1], [0], [0], [1], [0, 0, 1, 1], [], []>} : vector<8x128xbf16>, vector<128x256xbf16>, vector<8x256xf32> -> vector<8x256xf32>
      %c0_41 = arith.constant 0 : index
      %c0_42 = arith.constant 0 : index
      %c0_43 = arith.constant 0 : index
      %54 = vector.load %arg13[%c0_41, %c0_42, %c0_43] : memref<1x8x256xf32, #tpu.memory_space<vmem>>, vector<1x8x256xf32>
      %55 = vector.shape_cast %54 : vector<1x8x256xf32> to vector<8x256xf32>
      %56 = vector.shape_cast %53 : vector<8x256xf32> to vector<1x8x256xf32>
      tpu.vector_store %arg13[%c0_41, %c0_42, %c0_43], %56 {strides = array<i32>} : memref<1x8x256xf32, #tpu.memory_space<vmem>>, vector<1x8x256xf32>,
    } else {
    }
    return
  }
  func.func @transform_0(%arg0: i32) -> (i32, i32, i32) {
    %c0_i32 = arith.constant 0 : i32
    %c0_i32_0 = arith.constant 0 : i32
    %c0_i32_1 = arith.constant 0 : i32
    return %arg0, %c0_i32, %c0_i32_0 : i32, i32, i32
  }
  func.func @transform_1(%arg0: i32) -> (i32, i32, i32) {
    %c0_i32 = arith.constant 0 : i32
    %c0_i32_0 = arith.constant 0 : i32
    %c0_i32_1 = arith.constant 0 : i32
    return %arg0, %c0_i32, %c0_i32_0 : i32, i32, i32
  }
  func.func @transform_2(%arg0: i32) -> (i32, i32, i32) {
    %c0_i32 = arith.constant 0 : i32
    %c0_i32_0 = arith.constant 0 : i32
    %c0_i32_1 = arith.constant 0 : i32
    return %arg0, %c0_i32, %c0_i32_0 : i32, i32, i32
  }
  func.func @transform_3(%arg0: i32) -> (i32, i32, i32) {
    %c0_i32 = arith.constant 0 : i32
    %c0_i32_0 = arith.constant 0 : i32
    %c0_i32_1 = arith.constant 0 : i32
    return %arg0, %c0_i32, %c0_i32_0 : i32, i32, i32
  }
  func.func @transform_4(%arg0: i32) -> (i32, i32, i32) {
    %c0_i32 = arith.constant 0 : i32
    %c0_i32_0 = arith.constant 0 : i32
    %c0_i32_1 = arith.constant 0 : i32
    return %arg0, %c0_i32, %c0_i32_0 : i32, i32, i32
  }
  func.func @transform_5(%arg0: i32) -> (i32, i32, i32) {
    %c0_i32 = arith.constant 0 : i32
    %c0_i32_0 = arith.constant 0 : i32
    %c0_i32_1 = arith.constant 0 : i32
    return %arg0, %c0_i32, %c0_i32_0 : i32, i32, i32
  }
  func.func @transform_6(%arg0: i32) -> (i32, i32, i32) {
    %c0_i32 = arith.constant 0 : i32
    %c0_i32_0 = arith.constant 0 : i32
    %c0_i32_1 = arith.constant 0 : i32
    return %arg0, %c0_i32, %c0_i32_0 : i32, i32, i32
  }
  func.func @transform_7(%arg0: i32) -> (i32, i32) {
    %c0_i32 = arith.constant 0 : i32
    %c0_i32_0 = arith.constant 0 : i32
    %c0_i32_1 = arith.constant 0 : i32
    return %c0_i32, %c0_i32_0 : i32, i32
  }
  func.func @transform_8(%arg0: i32) -> (i32, i32) {
    %c0_i32 = arith.constant 0 : i32
    %c0_i32_0 = arith.constant 0 : i32
    %c0_i32_1 = arith.constant 0 : i32
    return %c0_i32, %c0_i32_0 : i32, i32
  }
  func.func @transform_9(%arg0: i32) -> (i32, i32) {
    %c0_i32 = arith.constant 0 : i32
    %c0_i32_0 = arith.constant 0 : i32
    %c0_i32_1 = arith.constant 0 : i32
    return %c0_i32, %c0_i32_0 : i32, i32
  }
  func.func @transform_10(%arg0: i32) -> (i32, i32, i32) {
    %c0_i32 = arith.constant 0 : i32
    %c0_i32_0 = arith.constant 0 : i32
    %c0_i32_1 = arith.constant 0 : i32
    return %arg0, %c0_i32, %c0_i32_0 : i32, i32, i32
  }
  func.func @transform_11(%arg0: i32) -> (i32, i32, i32) {
    %c0_i32 = arith.constant 0 : i32
    %c0_i32_0 = arith.constant 0 : i32
    %c0_i32_1 = arith.constant 0 : i32
    return %arg0, %c0_i32, %c0_i32_0 : i32, i32, i32
  }
  func.func @transform_12(%arg0: i32) -> (i32, i32, i32) {
    %c0_i32 = arith.constant 0 : i32
    %c0_i32_0 = arith.constant 0 : i32
    %c0_i32_1 = arith.constant 0 : i32
    return %arg0, %c0_i32, %c0_i32_0 : i32, i32, i32
  }
}

</mosaic_0001>

<llo_original>
// kernel: forward_mocov2.1
$region0: #{forward_mocov2.1}
  #allocation0 [shape = 'u32[]', space=smem, size = 0x4, offset = 0x4, fixed_abs, tag = 'smem constant byte address 0x4 - core index']
  #allocation1 [shape = 'u32[72,128]{1,0:T(1,128)}', space=vmem, size = 0x9000, scoped, tag = 'internal scratch']
  %s0 = inlined_call_operand.vmem [shape: bf16[2,8,768], index: 0, kind: input, shape index: {}]
  %s1 = inlined_call_operand.vmem [shape: bf16[2,768,128], index: 1, kind: input, shape index: {}]
  %s2 = inlined_call_operand.vmem [shape: f32[2,1,128], index: 2, kind: input, shape index: {}]
  %s3 = inlined_call_operand.vmem [shape: bf16[2,128,128], index: 3, kind: input, shape index: {}]
  %s4 = inlined_call_operand.vmem [shape: f32[2,1,128], index: 4, kind: input, shape index: {}]
  %s5 = inlined_call_operand.vmem [shape: bf16[2,128,128], index: 5, kind: input, shape index: {}]
  %s6 = inlined_call_operand.vmem [shape: f32[2,1,128], index: 6, kind: input, shape index: {}]
  %s7 = inlined_call_operand.vmem [shape: bf16[128,1024], index: 7, kind: input, shape index: {}]
  %s8 = inlined_call_operand.vmem [shape: f32[1,1024], index: 8, kind: input, shape index: {}]
  %s9 = inlined_call_operand.vmem [shape: bf16[128,256], index: 9, kind: input, shape index: {}]
  %s10 = inlined_call_operand.vmem [shape: f32[2,8,128], index: 10, kind: output, shape index: {0}]
  %s11 = inlined_call_operand.vmem [shape: f32[2,8,1024], index: 11, kind: output, shape index: {1}]
  %s12 = inlined_call_operand.vmem [shape: f32[2,8,256], index: 12, kind: output, shape index: {2}]
  %13 = xla_tuple %s10, %s11, %s12
  %s14 = sld [smem:[#allocation0]]
  $region93: #{forward_mocov2.1} parent=0
    _
  %s16 = ssub.s32 1, %s14
  %s17 = scalar_select 0, %s16, %s14
  loop: start=0, step=1, limit=4
  $region2: #{forward_mocov2.1} parent=0 // loop_pre_header
    _
  $region3: #{forward_mocov2.1} parent=0 // loop_header
    %s19 = sphi 0, %s23
    %p20 = scmp.ge.s32.totalorder %s19, 4
    %s29 = sphi 0, %s31
    %s32 = sphi 0, %s29
    %s33 = sphi 0, %s32
    %s49 = sphi 0, %s33
    %s55 = sphi 0, %s57
    %s58 = sphi 0, %s55
    %s59 = sphi 0, %s58
    %s75 = sphi 0, %s59
    %s81 = sphi 0, %s83
    %s84 = sphi 0, %s81
    %s85 = sphi 0, %s84
    %s101 = sphi 0, %s85
    %s107 = sphi 0, %s109
    %s110 = sphi 0, %s107
    %s111 = sphi 0, %s110
    %s127 = sphi 0, %s111
    %s133 = sphi 0, %s135
    %s136 = sphi 0, %s133
    %s137 = sphi 0, %s136
    %s153 = sphi 0, %s137
    %s159 = sphi 0, %s161
    %s162 = sphi 0, %s159
    %s163 = sphi 0, %s162
    %s179 = sphi 0, %s163
    %s185 = sphi 0, %s187
    %s188 = sphi 0, %s185
    %s189 = sphi 0, %s188
    %s205 = sphi 0, %s189
    %s209 = sphi 0, %s209
    %s211 = sphi 0, %s209
    %s212 = sphi 0, %s211
    %s226 = sphi 0, %s212
    %s230 = sphi 0, %s230
    %s232 = sphi 0, %s230
    %s233 = sphi 0, %s232
    %s247 = sphi 0, %s233
    %s251 = sphi 0, %s251
    %s253 = sphi 0, %s251
    %s254 = sphi 0, %s253
    %s268 = sphi 0, %s254
    %s274 = sphi 0, %s276
    %s277 = sphi 0, %s274
    %s278 = sphi 0, %s277
    %s294 = sphi 0, %s278
    %s300 = sphi 0, %s302
    %s303 = sphi 0, %s300
    %s304 = sphi 0, %s303
    %s320 = sphi 0, %s304
    %s326 = sphi 0, %s328
    %s329 = sphi 0, %s326
    %s330 = sphi 0, %s329
    %s346 = sphi 0, %s330
  $region4: #{forward_mocov2.1} parent=0 // loop_header_branch
    %22 = sbr.rel (%p20) target = $region8
  $region5: #{forward_mocov2.1} parent=0 // loop_body
    %s24 = ssub.s32 %s19, 1
    %s25 = ssub.s32 %s19, 2
    %s26 = sadd.s32 %s19, 1
    %s27 = ssub.s32 %s19, %s26
    %p28 = scmp.eq.s32.totalorder %s27, 0
    %s30 = sadd.s32 %s29, 1
    %s31 = scalar_select %p28, %s29, %s30
    %p34 = pneg %p28
    %p35 = scmp.eq.s32.totalorder %s19, 1
    %p36 = por %p34, %p35
    %p37 = scmp.ne.s32.totalorder %s29, %s32
    %p38 = scmp.eq.s32.totalorder %s19, 0
    %p39 = por %p37, %p38
    %p40 = scmp.ne.s32.totalorder %s29, %s32
    %p41 = scmp.eq.s32.totalorder %s24, 1
    %p42 = por %p40, %p41
    %p43 = scmp.ne.s32.totalorder %s32, %s33
    %p44 = scmp.eq.s32.totalorder %s24, 0
    %p45 = por %p43, %p44
    %p46 = scmp.ne.s32.totalorder %s32, %s33
    %p47 = scmp.eq.s32.totalorder %s25, 1
    %p48 = por %p46, %p47
    %p50 = scmp.ne.s32.totalorder %s33, %s49
    %p51 = scmp.eq.s32.totalorder %s25, 0
    %p52 = por %p50, %p51
    %s53 = ssub.s32 %s19, %s26
    %p54 = scmp.eq.s32.totalorder %s53, 0
    %s56 = sadd.s32 %s55, 1
    %s57 = scalar_select %p54, %s55, %s56
    %p60 = pneg %p54
    %p61 = scmp.eq.s32.totalorder %s19, 1
    %p62 = por %p60, %p61
    %p63 = scmp.ne.s32.totalorder %s55, %s58
    %p64 = scmp.eq.s32.totalorder %s19, 0
    %p65 = por %p63, %p64
    %p66 = scmp.ne.s32.totalorder %s55, %s58
    %p67 = scmp.eq.s32.totalorder %s24, 1
    %p68 = por %p66, %p67
    %p69 = scmp.ne.s32.totalorder %s58, %s59
    %p70 = scmp.eq.s32.totalorder %s24, 0
    %p71 = por %p69, %p70
    %p72 = scmp.ne.s32.totalorder %s58, %s59
    %p73 = scmp.eq.s32.totalorder %s25, 1
    %p74 = por %p72, %p73
    %p76 = scmp.ne.s32.totalorder %s59, %s75
    %p77 = scmp.eq.s32.totalorder %s25, 0
    %p78 = por %p76, %p77
    %s79 = ssub.s32 %s19, %s26
    %p80 = scmp.eq.s32.totalorder %s79, 0
    %s82 = sadd.s32 %s81, 1
    %s83 = scalar_select %p80, %s81, %s82
    %p86 = pneg %p80
    %p87 = scmp.eq.s32.totalorder %s19, 1
    %p88 = por %p86, %p87
    %p89 = scmp.ne.s32.totalorder %s81, %s84
    %p90 = scmp.eq.s32.totalorder %s19, 0
    %p91 = por %p89, %p90
    %p92 = scmp.ne.s32.totalorder %s81, %s84
    %p93 = scmp.eq.s32.totalorder %s24, 1
    %p94 = por %p92, %p93
    %p95 = scmp.ne.s32.totalorder %s84, %s85
    %p96 = scmp.eq.s32.totalorder %s24, 0
    %p97 = por %p95, %p96
    %p98 = scmp.ne.s32.totalorder %s84, %s85
    %p99 = scmp.eq.s32.totalorder %s25, 1
    %p100 = por %p98, %p99
    %p102 = scmp.ne.s32.totalorder %s85, %s101
    %p103 = scmp.eq.s32.totalorder %s25, 0
    %p104 = por %p102, %p103
    %s105 = ssub.s32 %s19, %s26
    %p106 = scmp.eq.s32.totalorder %s105, 0
    %s108 = sadd.s32 %s107, 1
    %s109 = scalar_select %p106, %s107, %s108
    %p112 = pneg %p106
    %p113 = scmp.eq.s32.totalorder %s19, 1
    %p114 = por %p112, %p113
    %p115 = scmp.ne.s32.totalorder %s107, %s110
    %p116 = scmp.eq.s32.totalorder %s19, 0
    %p117 = por %p115, %p116
    %p118 = scmp.ne.s32.totalorder %s107, %s110
    %p119 = scmp.eq.s32.totalorder %s24, 1
    %p120 = por %p118, %p119
    %p121 = scmp.ne.s32.totalorder %s110, %s111
    %p122 = scmp.eq.s32.totalorder %s24, 0
    %p123 = por %p121, %p122
    %p124 = scmp.ne.s32.totalorder %s110, %s111
    %p125 = scmp.eq.s32.totalorder %s25, 1
    %p126 = por %p124, %p125
    %p128 = scmp.ne.s32.totalorder %s111, %s127
    %p129 = scmp.eq.s32.totalorder %s25, 0
    %p130 = por %p128, %p129
    %s131 = ssub.s32 %s19, %s26
    %p132 = scmp.eq.s32.totalorder %s131, 0
    %s134 = sadd.s32 %s133, 1
    %s135 = scalar_select %p132, %s133, %s134
    %p138 = pneg %p132
    %p139 = scmp.eq.s32.totalorder %s19, 1
    %p140 = por %p138, %p139
    %p141 = scmp.ne.s32.totalorder %s133, %s136
    %p142 = scmp.eq.s32.totalorder %s19, 0
    %p143 = por %p141, %p142
    %p144 = scmp.ne.s32.totalorder %s133, %s136
    %p145 = scmp.eq.s32.totalorder %s24, 1
    %p146 = por %p144, %p145
    %p147 = scmp.ne.s32.totalorder %s136, %s137
    %p148 = scmp.eq.s32.totalorder %s24, 0
    %p149 = por %p147, %p148
    %p150 = scmp.ne.s32.totalorder %s136, %s137
    %p151 = scmp.eq.s32.totalorder %s25, 1
    %p152 = por %p150, %p151
    %p154 = scmp.ne.s32.totalorder %s137, %s153
    %p155 = scmp.eq.s32.totalorder %s25, 0
    %p156 = por %p154, %p155
    %s157 = ssub.s32 %s19, %s26
    %p158 = scmp.eq.s32.totalorder %s157, 0
    %s160 = sadd.s32 %s159, 1
    %s161 = scalar_select %p158, %s159, %s160
    %p164 = pneg %p158
    %p165 = scmp.eq.s32.totalorder %s19, 1
    %p166 = por %p164, %p165
    %p167 = scmp.ne.s32.totalorder %s159, %s162
    %p168 = scmp.eq.s32.totalorder %s19, 0
    %p169 = por %p167, %p168
    %p170 = scmp.ne.s32.totalorder %s159, %s162
    %p171 = scmp.eq.s32.totalorder %s24, 1
    %p172 = por %p170, %p171
    %p173 = scmp.ne.s32.totalorder %s162, %s163
    %p174 = scmp.eq.s32.totalorder %s24, 0
    %p175 = por %p173, %p174
    %p176 = scmp.ne.s32.totalorder %s162, %s163
    %p177 = scmp.eq.s32.totalorder %s25, 1
    %p178 = por %p176, %p177
    %p180 = scmp.ne.s32.totalorder %s163, %s179
    %p181 = scmp.eq.s32.totalorder %s25, 0
    %p182 = por %p180, %p181
    %s183 = ssub.s32 %s19, %s26
    %p184 = scmp.eq.s32.totalorder %s183, 0
    %s186 = sadd.s32 %s185, 1
    %s187 = scalar_select %p184, %s185, %s186
    %p190 = pneg %p184
    %p191 = scmp.eq.s32.totalorder %s19, 1
    %p192 = por %p190, %p191
    %p193 = scmp.ne.s32.totalorder %s185, %s188
    %p194 = scmp.eq.s32.totalorder %s19, 0
    %p195 = por %p193, %p194
    %p196 = scmp.ne.s32.totalorder %s185, %s188
    %p197 = scmp.eq.s32.totalorder %s24, 1
    %p198 = por %p196, %p197
    %p199 = scmp.ne.s32.totalorder %s188, %s189
    %p200 = scmp.eq.s32.totalorder %s24, 0
    %p201 = por %p199, %p200
    %p202 = scmp.ne.s32.totalorder %s188, %s189
    %p203 = scmp.eq.s32.totalorder %s25, 1
    %p204 = por %p202, %p203
    %p206 = scmp.ne.s32.totalorder %s189, %s205
    %p207 = scmp.eq.s32.totalorder %s25, 0
    %p208 = por %p206, %p207
    %s210 = sadd.s32 %s209, 1
    %p213 = scmp.eq.s32.totalorder %s19, 1
    %p214 = scmp.ne.s32.totalorder %s209, %s211
    %p215 = scmp.eq.s32.totalorder %s19, 0
    %p216 = por %p214, %p215
    %p217 = scmp.ne.s32.totalorder %s209, %s211
    %p218 = scmp.eq.s32.totalorder %s24, 1
    %p219 = por %p217, %p218
    %p220 = scmp.ne.s32.totalorder %s211, %s212
    %p221 = scmp.eq.s32.totalorder %s24, 0
    %p222 = por %p220, %p221
    %p223 = scmp.ne.s32.totalorder %s211, %s212
    %p224 = scmp.eq.s32.totalorder %s25, 1
    %p225 = por %p223, %p224
    %p227 = scmp.ne.s32.totalorder %s212, %s226
    %p228 = scmp.eq.s32.totalorder %s25, 0
    %p229 = por %p227, %p228
    %s231 = sadd.s32 %s230, 1
    %p234 = scmp.eq.s32.totalorder %s19, 1
    %p235 = scmp.ne.s32.totalorder %s230, %s232
    %p236 = scmp.eq.s32.totalorder %s19, 0
    %p237 = por %p235, %p236
    %p238 = scmp.ne.s32.totalorder %s230, %s232
    %p239 = scmp.eq.s32.totalorder %s24, 1
    %p240 = por %p238, %p239
    %p241 = scmp.ne.s32.totalorder %s232, %s233
    %p242 = scmp.eq.s32.totalorder %s24, 0
    %p243 = por %p241, %p242
    %p244 = scmp.ne.s32.totalorder %s232, %s233
    %p245 = scmp.eq.s32.totalorder %s25, 1
    %p246 = por %p244, %p245
    %p248 = scmp.ne.s32.totalorder %s233, %s247
    %p249 = scmp.eq.s32.totalorder %s25, 0
    %p250 = por %p248, %p249
    %s252 = sadd.s32 %s251, 1
    %p255 = scmp.eq.s32.totalorder %s19, 1
    %p256 = scmp.ne.s32.totalorder %s251, %s253
    %p257 = scmp.eq.s32.totalorder %s19, 0
    %p258 = por %p256, %p257
    %p259 = scmp.ne.s32.totalorder %s251, %s253
    %p260 = scmp.eq.s32.totalorder %s24, 1
    %p261 = por %p259, %p260
    %p262 = scmp.ne.s32.totalorder %s253, %s254
    %p263 = scmp.eq.s32.totalorder %s24, 0
    %p264 = por %p262, %p263
    %p265 = scmp.ne.s32.totalorder %s253, %s254
    %p266 = scmp.eq.s32.totalorder %s25, 1
    %p267 = por %p265, %p266
    %p269 = scmp.ne.s32.totalorder %s254, %s268
    %p270 = scmp.eq.s32.totalorder %s25, 0
    %p271 = por %p269, %p270
    %s272 = ssub.s32 %s19, %s26
    %p273 = scmp.eq.s32.totalorder %s272, 0
    %s275 = sadd.s32 %s274, 1
    %s276 = scalar_select %p273, %s274, %s275
    %p279 = pneg %p273
    %p280 = scmp.eq.s32.totalorder %s19, 1
    %p281 = por %p279, %p280
    %p282 = scmp.ne.s32.totalorder %s274, %s277
    %p283 = scmp.eq.s32.totalorder %s19, 0
    %p284 = por %p282, %p283
    %p285 = scmp.ne.s32.totalorder %s274, %s277
    %p286 = scmp.eq.s32.totalorder %s24, 1
    %p287 = por %p285, %p286
    %p288 = scmp.ne.s32.totalorder %s277, %s278
    %p289 = scmp.eq.s32.totalorder %s24, 0
    %p290 = por %p288, %p289
    %p291 = scmp.ne.s32.totalorder %s277, %s278
    %p292 = scmp.eq.s32.totalorder %s25, 1
    %p293 = por %p291, %p292
    %p295 = scmp.ne.s32.totalorder %s278, %s294
    %p296 = scmp.eq.s32.totalorder %s25, 0
    %p297 = por %p295, %p296
    %s298 = ssub.s32 %s19, %s26
    %p299 = scmp.eq.s32.totalorder %s298, 0
    %s301 = sadd.s32 %s300, 1
    %s302 = scalar_select %p299, %s300, %s301
    %p305 = pneg %p299
    %p306 = scmp.eq.s32.totalorder %s19, 1
    %p307 = por %p305, %p306
    %p308 = scmp.ne.s32.totalorder %s300, %s303
    %p309 = scmp.eq.s32.totalorder %s19, 0
    %p310 = por %p308, %p309
    %p311 = scmp.ne.s32.totalorder %s300, %s303
    %p312 = scmp.eq.s32.totalorder %s24, 1
    %p313 = por %p311, %p312
    %p314 = scmp.ne.s32.totalorder %s303, %s304
    %p315 = scmp.eq.s32.totalorder %s24, 0
    %p316 = por %p314, %p315
    %p317 = scmp.ne.s32.totalorder %s303, %s304
    %p318 = scmp.eq.s32.totalorder %s25, 1
    %p319 = por %p317, %p318
    %p321 = scmp.ne.s32.totalorder %s304, %s320
    %p322 = scmp.eq.s32.totalorder %s25, 0
    %p323 = por %p321, %p322
    %s324 = ssub.s32 %s19, %s26
    %p325 = scmp.eq.s32.totalorder %s324, 0
    %s327 = sadd.s32 %s326, 1
    %s328 = scalar_select %p325, %s326, %s327
    %p331 = pneg %p325
    %p332 = scmp.eq.s32.totalorder %s19, 1
    %p333 = por %p331, %p332
    %p334 = scmp.ne.s32.totalorder %s326, %s329
    %p335 = scmp.eq.s32.totalorder %s19, 0
    %p336 = por %p334, %p335
    %p337 = scmp.ne.s32.totalorder %s326, %s329
    %p338 = scmp.eq.s32.totalorder %s24, 1
    %p339 = por %p337, %p338
    %p340 = scmp.ne.s32.totalorder %s329, %s330
    %p341 = scmp.eq.s32.totalorder %s24, 0
    %p342 = por %p340, %p341
    %p343 = scmp.ne.s32.totalorder %s329, %s330
    %p344 = scmp.eq.s32.totalorder %s25, 1
    %p345 = por %p343, %p344
    %p347 = scmp.ne.s32.totalorder %s330, %s346
    %p348 = scmp.eq.s32.totalorder %s25, 0
    %p349 = por %p347, %p348
    %p350 = scmp.le.s32.totalorder 1, %s19
    %p351 = scmp.lt.s32.totalorder %s19, 3
    %p352 = pnand %p350, %p351
    %p353 = pneg %p352
    // Predicated region
    $region9: #{forward_mocov2.1} parent=5 // pred_check
      _
    $region10: #{forward_mocov2.1} parent=5 // pred_check_branch
      %355 = sbr.rel (%p352) target = $region12
    $region11: #{forward_mocov2.1} parent=5 // pred_region
      %s356 = ssub.s32 %s19, 1
      // Predicated region
      $region13: #{forward_mocov2.1} parent=11 // pred_check
        %p357 = pneg %p222
      $region14: #{forward_mocov2.1} parent=11 // pred_check_branch
        %359 = sbr.rel (%p357) target = $region16
      $region15: #{forward_mocov2.1} parent=11 // pred_region
        _
      $region16: #{forward_mocov2.1} parent=11 // pred_fallthru
        _
      // Predicated region
      $region17: #{forward_mocov2.1} parent=11 // pred_check
        %p360 = pneg %p243
      $region18: #{forward_mocov2.1} parent=11 // pred_check_branch
        %362 = sbr.rel (%p360) target = $region20
      $region19: #{forward_mocov2.1} parent=11 // pred_region
        _
      $region20: #{forward_mocov2.1} parent=11 // pred_fallthru
        _
      // Predicated region
      $region21: #{forward_mocov2.1} parent=11 // pred_check
        %p363 = pneg %p264
      $region22: #{forward_mocov2.1} parent=11 // pred_check_branch
        %365 = sbr.rel (%p363) target = $region24
      $region23: #{forward_mocov2.1} parent=11 // pred_region
        _
      $region24: #{forward_mocov2.1} parent=11 // pred_fallthru
        _
    $region12: #{forward_mocov2.1} parent=5 // pred_fallthru
      _
    %p366 = scmp.lt.s32.totalorder %s19, 2
    // Predicated region
    $region25: #{forward_mocov2.1} parent=5 // pred_check
      %p367 = pneg %p366
    $region26: #{forward_mocov2.1} parent=5 // pred_check_branch
      %369 = sbr.rel (%p367) target = $region28
    $region27: #{forward_mocov2.1} parent=5 // pred_region
      // Predicated region
      $region29: #{forward_mocov2.1} parent=27 // pred_check
        %p370 = pneg %p39
      $region30: #{forward_mocov2.1} parent=27 // pred_check_branch
        %372 = sbr.rel (%p370) target = $region32
      $region31: #{forward_mocov2.1} parent=27 // pred_region
        %p373 = scmp.lt.s32.totalorder %s19, 1
        %s374 = scalar_select %p373, %s19, 1
        %s375 = smul.addr %s374, 6
        %s376 = smul.addr %s375, 4
        %s377 = scalar_lea.vmem %s0, %s376
      $region32: #{forward_mocov2.1} parent=27 // pred_fallthru
        _
      // Predicated region
      $region33: #{forward_mocov2.1} parent=27 // pred_check
        %p378 = pneg %p65
      $region34: #{forward_mocov2.1} parent=27 // pred_check_branch
        %380 = sbr.rel (%p378) target = $region36
      $region35: #{forward_mocov2.1} parent=27 // pred_region
        %p381 = scmp.lt.s32.totalorder %s19, 1
        %s382 = scalar_select %p381, %s19, 1
        %s383 = smul.addr %s382, 96
        %s384 = smul.addr %s383, 4
        %s385 = scalar_lea.vmem %s1, %s384
      $region36: #{forward_mocov2.1} parent=27 // pred_fallthru
        _
      // Predicated region
      $region37: #{forward_mocov2.1} parent=27 // pred_check
        %p386 = pneg %p91
      $region38: #{forward_mocov2.1} parent=27 // pred_check_branch
        %388 = sbr.rel (%p386) target = $region40
      $region39: #{forward_mocov2.1} parent=27 // pred_region
        %p389 = scmp.lt.s32.totalorder %s19, 1
        %s390 = scalar_select %p389, %s19, 1
        %s391 = scalar_lea.vmem %s2, %s390
      $region40: #{forward_mocov2.1} parent=27 // pred_fallthru
        _
      // Predicated region
      $region41: #{forward_mocov2.1} parent=27 // pred_check
        %p392 = pneg %p117
      $region42: #{forward_mocov2.1} parent=27 // pred_check_branch
        %394 = sbr.rel (%p392) target = $region44
      $region43: #{forward_mocov2.1} parent=27 // pred_region
        %p395 = scmp.lt.s32.totalorder %s19, 1
        %s396 = scalar_select %p395, %s19, 1
        %s397 = smul.addr %s396, 16
        %s398 = smul.addr %s397, 4
        %s399 = scalar_lea.vmem %s3, %s398
      $region44: #{forward_mocov2.1} parent=27 // pred_fallthru
        _
      // Predicated region
      $region45: #{forward_mocov2.1} parent=27 // pred_check
        %p400 = pneg %p143
      $region46: #{forward_mocov2.1} parent=27 // pred_check_branch
        %402 = sbr.rel (%p400) target = $region48
      $region47: #{forward_mocov2.1} parent=27 // pred_region
        %p403 = scmp.lt.s32.totalorder %s19, 1
        %s404 = scalar_select %p403, %s19, 1
        %s405 = scalar_lea.vmem %s4, %s404
      $region48: #{forward_mocov2.1} parent=27 // pred_fallthru
        _
      // Predicated region
      $region49: #{forward_mocov2.1} parent=27 // pred_check
        %p406 = pneg %p169
      $region50: #{forward_mocov2.1} parent=27 // pred_check_branch
        %408 = sbr.rel (%p406) target = $region52
      $region51: #{forward_mocov2.1} parent=27 // pred_region
        %p409 = scmp.lt.s32.totalorder %s19, 1
        %s410 = scalar_select %p409, %s19, 1
        %s411 = smul.addr %s410, 16
        %s412 = smul.addr %s411, 4
        %s413 = scalar_lea.vmem %s5, %s412
      $region52: #{forward_mocov2.1} parent=27 // pred_fallthru
        _
      // Predicated region
      $region53: #{forward_mocov2.1} parent=27 // pred_check
        %p414 = pneg %p195
      $region54: #{forward_mocov2.1} parent=27 // pred_check_branch
        %416 = sbr.rel (%p414) target = $region56
      $region55: #{forward_mocov2.1} parent=27 // pred_region
        %p417 = scmp.lt.s32.totalorder %s19, 1
        %s418 = scalar_select %p417, %s19, 1
        %s419 = scalar_lea.vmem %s6, %s418
      $region56: #{forward_mocov2.1} parent=27 // pred_fallthru
        _
    $region28: #{forward_mocov2.1} parent=5 // pred_fallthru
      _
    %p420 = scmp.le.s32.totalorder 1, %s19
    %p421 = scmp.lt.s32.totalorder %s19, 3
    %p422 = pnand %p420, %p421
    %p423 = pneg %p422
    // Predicated region
    $region57: #{forward_mocov2.1} parent=5 // pred_check
      _
    $region58: #{forward_mocov2.1} parent=5 // pred_check_branch
      %425 = sbr.rel (%p422) target = $region60
    $region59: #{forward_mocov2.1} parent=5 // pred_region
      %s426 = ssub.s32 %s19, 1
      %p427 = scmp.lt.s32.totalorder %s24, 1
      %s428 = scalar_select %p427, %s24, 1
      %s429 = smul.addr %s428, 6
      %s430 = smul.addr %s429, 4
      %s431 = scalar_lea.vmem %s0, %s430
      %p432 = pneg %p45
      %p433 = pneg %p42
      %p434 = scmp.lt.s32.totalorder %s24, 1
      %s435 = scalar_select %p434, %s24, 1
      %s436 = smul.addr %s435, 96
      %s437 = smul.addr %s436, 4
      %s438 = scalar_lea.vmem %s1, %s437
      %p439 = pneg %p71
      %p440 = pneg %p68
      %p441 = scmp.lt.s32.totalorder %s24, 1
      %s442 = scalar_select %p441, %s24, 1
      %s443 = scalar_lea.vmem %s2, %s442
      %p444 = pneg %p97
      %p445 = pneg %p94
      %p446 = scmp.lt.s32.totalorder %s24, 1
      %s447 = scalar_select %p446, %s24, 1
      %s448 = smul.addr %s447, 16
      %s449 = smul.addr %s448, 4
      %s450 = scalar_lea.vmem %s3, %s449
      %p451 = pneg %p123
      %p452 = pneg %p120
      %p453 = scmp.lt.s32.totalorder %s24, 1
      %s454 = scalar_select %p453, %s24, 1
      %s455 = scalar_lea.vmem %s4, %s454
      %p456 = pneg %p149
      %p457 = pneg %p146
      %p458 = scmp.lt.s32.totalorder %s24, 1
      %s459 = scalar_select %p458, %s24, 1
      %s460 = smul.addr %s459, 16
      %s461 = smul.addr %s460, 4
      %s462 = scalar_lea.vmem %s5, %s461
      %p463 = pneg %p175
      %p464 = pneg %p172
      %p465 = scmp.lt.s32.totalorder %s24, 1
      %s466 = scalar_select %p465, %s24, 1
      %s467 = scalar_lea.vmem %s6, %s466
      %p468 = pneg %p201
      %p469 = pneg %p198
      %p470 = pneg %p222
      %p471 = pneg %p219
      %p472 = pneg %p243
      %p473 = pneg %p240
      %p474 = pneg %p264
      %p475 = pneg %p261
      %p476 = pneg %p290
      %p477 = pneg %p287
      %p478 = scmp.lt.s32.totalorder %s24, 1
      %s479 = scalar_select %p478, %s24, 1
      %s480 = smul.addr %s479, 8
      %s481 = scalar_lea.vmem %s10, %s480
      %p482 = pneg %p316
      %p483 = pneg %p313
      %p484 = scmp.lt.s32.totalorder %s24, 1
      %s485 = scalar_select %p484, %s24, 1
      %s486 = smul.addr %s485, 8
      %s487 = smul.addr %s486, 8
      %s488 = scalar_lea.vmem %s11, %s487
      %p489 = pneg %p342
      %p490 = pneg %p339
      %p491 = scmp.lt.s32.totalorder %s24, 1
      %s492 = scalar_select %p491, %s24, 1
      %s493 = smul.addr %s492, 2
      %s494 = smul.addr %s493, 8
      %s495 = scalar_lea.vmem %s12, %s494
      %p496 = scmp.lt.s32.totalorder %s24, 1
      %s497 = scalar_select %p496, %s24, 1
      %s498 = smul.addr %s497, 6
      %s499 = smul.addr %s498, 4
      %s500 = scalar_lea.vmem %s0, %s499
      %p501 = scmp.lt.s32.totalorder %s24, 1
      %s502 = scalar_select %p501, %s24, 1
      %s503 = smul.addr %s502, 96
      %s504 = smul.addr %s503, 4
      %s505 = scalar_lea.vmem %s1, %s504
      %p506 = scmp.lt.s32.totalorder %s24, 1
      %s507 = scalar_select %p506, %s24, 1
      %s508 = scalar_lea.vmem %s2, %s507
      %p509 = scmp.lt.s32.totalorder %s24, 1
      %s510 = scalar_select %p509, %s24, 1
      %s511 = smul.addr %s510, 16
      %s512 = smul.addr %s511, 4
      %s513 = scalar_lea.vmem %s3, %s512
      %p514 = scmp.lt.s32.totalorder %s24, 1
      %s515 = scalar_select %p514, %s24, 1
      %s516 = scalar_lea.vmem %s4, %s515
      %p517 = scmp.lt.s32.totalorder %s24, 1
      %s518 = scalar_select %p517, %s24, 1
      %s519 = smul.addr %s518, 16
      %s520 = smul.addr %s519, 4
      %s521 = scalar_lea.vmem %s5, %s520
      %p522 = scmp.lt.s32.totalorder %s24, 1
      %s523 = scalar_select %p522, %s24, 1
      %s524 = scalar_lea.vmem %s6, %s523
      %p525 = scmp.lt.s32.totalorder %s24, 1
      %s526 = scalar_select %p525, %s24, 1
      %s527 = smul.addr %s526, 8
      %s528 = scalar_lea.vmem %s10, %s527
      %p529 = scmp.lt.s32.totalorder %s24, 1
      %s530 = scalar_select %p529, %s24, 1
      %s531 = smul.addr %s530, 8
      %s532 = smul.addr %s531, 8
      %s533 = scalar_lea.vmem %s11, %s532
      %p534 = scmp.lt.s32.totalorder %s24, 1
      %s535 = scalar_select %p534, %s24, 1
      %s536 = smul.addr %s535, 2
      %s537 = smul.addr %s536, 8
      %s538 = scalar_lea.vmem %s12, %s537
      %v539 = vld [vmem:[%s500] sm:$0xff]
      %v540 = vld [vmem:[%s500 + $0x8] sm:$0xff]
      %v541 = vld [vmem:[%s500 + $0x10] sm:$0xff]
      %v542 = vld [vmem:[%s505] sm:$0xf]
      %v543 = vld [vmem:[%s505 + $0x4] sm:$0xf]
      %v544 = vld [vmem:[%s505 + $0x8] sm:$0xf]
      %v545 = vld [vmem:[%s505 + $0xc] sm:$0xf]
      %v546 = vld [vmem:[%s505 + $0x10] sm:$0xf]
      %v547 = vld [vmem:[%s505 + $0x14] sm:$0xf]
      %v548 = vld [vmem:[%s505 + $0x18] sm:$0xf]
      %v549 = vld [vmem:[%s505 + $0x1c] sm:$0xf]
      %v550 = vld [vmem:[%s505 + $0x20] sm:$0xf]
      %v551 = vld [vmem:[%s505 + $0x24] sm:$0xf]
      %v552 = vld [vmem:[%s505 + $0x28] sm:$0xf]
      %v553 = vld [vmem:[%s505 + $0x2c] sm:$0xf]
      %v554 = vld [vmem:[%s505 + $0x30] sm:$0xf]
      %v555 = vld [vmem:[%s505 + $0x34] sm:$0xf]
      %v556 = vld [vmem:[%s505 + $0x38] sm:$0xf]
      %v557 = vld [vmem:[%s505 + $0x3c] sm:$0xf]
      %v558 = vld [vmem:[%s505 + $0x40] sm:$0xf]
      %v559 = vld [vmem:[%s505 + $0x44] sm:$0xf]
      %v560 = vld [vmem:[%s505 + $0x48] sm:$0xf]
      %v561 = vld [vmem:[%s505 + $0x4c] sm:$0xf]
      %v562 = vld [vmem:[%s505 + $0x50] sm:$0xf]
      %v563 = vld [vmem:[%s505 + $0x54] sm:$0xf]
      %v564 = vld [vmem:[%s505 + $0x58] sm:$0xf]
      %v565 = vld [vmem:[%s505 + $0x5c] sm:$0xf]
      %v566 = vld [vmem:[%s505 + $0x60] sm:$0xf]
      %v567 = vld [vmem:[%s505 + $0x64] sm:$0xf]
      %v568 = vld [vmem:[%s505 + $0x68] sm:$0xf]
      %v569 = vld [vmem:[%s505 + $0x6c] sm:$0xf]
      %v570 = vld [vmem:[%s505 + $0x70] sm:$0xf]
      %v571 = vld [vmem:[%s505 + $0x74] sm:$0xf]
      %v572 = vld [vmem:[%s505 + $0x78] sm:$0xf]
      %v573 = vld [vmem:[%s505 + $0x7c] sm:$0xf]
      %v574 = vld [vmem:[%s505 + $0x80] sm:$0xf]
      %v575 = vld [vmem:[%s505 + $0x84] sm:$0xf]
      %v576 = vld [vmem:[%s505 + $0x88] sm:$0xf]
      %v577 = vld [vmem:[%s505 + $0x8c] sm:$0xf]
      %v578 = vld [vmem:[%s505 + $0x90] sm:$0xf]
      %v579 = vld [vmem:[%s505 + $0x94] sm:$0xf]
      %v580 = vld [vmem:[%s505 + $0x98] sm:$0xf]
      %v581 = vld [vmem:[%s505 + $0x9c] sm:$0xf]
      %v582 = vld [vmem:[%s505 + $0xa0] sm:$0xf]
      %v583 = vld [vmem:[%s505 + $0xa4] sm:$0xf]
      %v584 = vld [vmem:[%s505 + $0xa8] sm:$0xf]
      %v585 = vld [vmem:[%s505 + $0xac] sm:$0xf]
      %v586 = vld [vmem:[%s505 + $0xb0] sm:$0xf]
      %v587 = vld [vmem:[%s505 + $0xb4] sm:$0xf]
      %v588 = vld [vmem:[%s505 + $0xb8] sm:$0xf]
      %v589 = vld [vmem:[%s505 + $0xbc] sm:$0xf]
      %v590 = vld [vmem:[%s505 + $0xc0] sm:$0xf]
      %v591 = vld [vmem:[%s505 + $0xc4] sm:$0xf]
      %v592 = vld [vmem:[%s505 + $0xc8] sm:$0xf]
      %v593 = vld [vmem:[%s505 + $0xcc] sm:$0xf]
      %v594 = vld [vmem:[%s505 + $0xd0] sm:$0xf]
      %v595 = vld [vmem:[%s505 + $0xd4] sm:$0xf]
      %v596 = vld [vmem:[%s505 + $0xd8] sm:$0xf]
      %v597 = vld [vmem:[%s505 + $0xdc] sm:$0xf]
      %v598 = vld [vmem:[%s505 + $0xe0] sm:$0xf]
      %v599 = vld [vmem:[%s505 + $0xe4] sm:$0xf]
      %v600 = vld [vmem:[%s505 + $0xe8] sm:$0xf]
      %v601 = vld [vmem:[%s505 + $0xec] sm:$0xf]
      %v602 = vld [vmem:[%s505 + $0xf0] sm:$0xf]
      %v603 = vld [vmem:[%s505 + $0xf4] sm:$0xf]
      %v604 = vld [vmem:[%s505 + $0xf8] sm:$0xf]
      %v605 = vld [vmem:[%s505 + $0xfc] sm:$0xf]
      %v606 = vld [vmem:[%s505 + $0x100] sm:$0xf]
      %v607 = vld [vmem:[%s505 + $0x104] sm:$0xf]
      %v608 = vld [vmem:[%s505 + $0x108] sm:$0xf]
      %v609 = vld [vmem:[%s505 + $0x10c] sm:$0xf]
      %v610 = vld [vmem:[%s505 + $0x110] sm:$0xf]
      %v611 = vld [vmem:[%s505 + $0x114] sm:$0xf]
      %v612 = vld [vmem:[%s505 + $0x118] sm:$0xf]
      %v613 = vld [vmem:[%s505 + $0x11c] sm:$0xf]
      %v614 = vld [vmem:[%s505 + $0x120] sm:$0xf]
      %v615 = vld [vmem:[%s505 + $0x124] sm:$0xf]
      %v616 = vld [vmem:[%s505 + $0x128] sm:$0xf]
      %v617 = vld [vmem:[%s505 + $0x12c] sm:$0xf]
      %v618 = vld [vmem:[%s505 + $0x130] sm:$0xf]
      %v619 = vld [vmem:[%s505 + $0x134] sm:$0xf]
      %v620 = vld [vmem:[%s505 + $0x138] sm:$0xf]
      %v621 = vld [vmem:[%s505 + $0x13c] sm:$0xf]
      %v622 = vld [vmem:[%s505 + $0x140] sm:$0xf]
      %v623 = vld [vmem:[%s505 + $0x144] sm:$0xf]
      %v624 = vld [vmem:[%s505 + $0x148] sm:$0xf]
      %v625 = vld [vmem:[%s505 + $0x14c] sm:$0xf]
      %v626 = vld [vmem:[%s505 + $0x150] sm:$0xf]
      %v627 = vld [vmem:[%s505 + $0x154] sm:$0xf]
      %v628 = vld [vmem:[%s505 + $0x158] sm:$0xf]
      %v629 = vld [vmem:[%s505 + $0x15c] sm:$0xf]
      %v630 = vld [vmem:[%s505 + $0x160] sm:$0xf]
      %v631 = vld [vmem:[%s505 + $0x164] sm:$0xf]
      %v632 = vld [vmem:[%s505 + $0x168] sm:$0xf]
      %v633 = vld [vmem:[%s505 + $0x16c] sm:$0xf]
      %v634 = vld [vmem:[%s505 + $0x170] sm:$0xf]
      %v635 = vld [vmem:[%s505 + $0x174] sm:$0xf]
      %v636 = vld [vmem:[%s505 + $0x178] sm:$0xf]
      %v637 = vld [vmem:[%s505 + $0x17c] sm:$0xf]
      %v638 = vld [vmem:[%s508] sm:$0x1]
      %v640 = vperm.slane %v638, 0
      %v645 = vunpack.c.l.b16 %v539
      %v646 = vunpack.c.h.b16 %v539
      %v647 = vunpack.c.l.b16 %v540
      %v648 = vunpack.c.h.b16 %v540
      %v649 = vunpack.c.l.b16 %v541
      %v650 = vunpack.c.h.b16 %v541
      %v651 = vpack.c.b16 %v645, %v645
      %v652 = vpack.c.b16 %v646, %v646
      %v653 = vpack.c.b16 %v647, %v647
      %v654 = vpack.c.b16 %v648, %v648
      %v655 = vpack.c.b16 %v649, %v649
      %v656 = vpack.c.b16 %v650, %v650
      %v759 = vunpack.c.l.b16 %v542
      %v760 = vunpack.c.l.b16 %v543
      %v761 = vunpack.c.l.b16 %v544
      %v762 = vunpack.c.l.b16 %v545
      %v763 = vunpack.c.l.b16 %v546
      %v764 = vunpack.c.l.b16 %v547
      %v765 = vunpack.c.l.b16 %v548
      %v766 = vunpack.c.l.b16 %v549
      %v767 = vunpack.c.l.b16 %v550
      %v768 = vunpack.c.l.b16 %v551
      %v769 = vunpack.c.l.b16 %v552
      %v770 = vunpack.c.l.b16 %v553
      %v771 = vunpack.c.l.b16 %v554
      %v772 = vunpack.c.l.b16 %v555
      %v773 = vunpack.c.l.b16 %v556
      %v774 = vunpack.c.l.b16 %v557
      %v775 = vunpack.c.l.b16 %v558
      %v776 = vunpack.c.l.b16 %v559
      %v777 = vunpack.c.l.b16 %v560
      %v778 = vunpack.c.l.b16 %v561
      %v779 = vunpack.c.l.b16 %v562
      %v780 = vunpack.c.l.b16 %v563
      %v781 = vunpack.c.l.b16 %v564
      %v782 = vunpack.c.l.b16 %v565
      %v783 = vunpack.c.l.b16 %v566
      %v784 = vunpack.c.l.b16 %v567
      %v785 = vunpack.c.l.b16 %v568
      %v786 = vunpack.c.l.b16 %v569
      %v787 = vunpack.c.l.b16 %v570
      %v788 = vunpack.c.l.b16 %v571
      %v789 = vunpack.c.l.b16 %v572
      %v790 = vunpack.c.l.b16 %v573
      %v791 = vunpack.c.l.b16 %v574
      %v792 = vunpack.c.l.b16 %v575
      %v793 = vunpack.c.l.b16 %v576
      %v794 = vunpack.c.l.b16 %v577
      %v795 = vunpack.c.l.b16 %v578
      %v796 = vunpack.c.l.b16 %v579
      %v797 = vunpack.c.l.b16 %v580
      %v798 = vunpack.c.l.b16 %v581
      %v799 = vunpack.c.l.b16 %v582
      %v800 = vunpack.c.l.b16 %v583
      %v801 = vunpack.c.l.b16 %v584
      %v802 = vunpack.c.l.b16 %v585
      %v803 = vunpack.c.l.b16 %v586
      %v804 = vunpack.c.l.b16 %v587
      %v805 = vunpack.c.l.b16 %v588
      %v806 = vunpack.c.l.b16 %v589
      %v807 = vunpack.c.l.b16 %v590
      %v808 = vunpack.c.l.b16 %v591
      %v809 = vunpack.c.l.b16 %v592
      %v810 = vunpack.c.l.b16 %v593
      %v811 = vunpack.c.l.b16 %v594
      %v812 = vunpack.c.l.b16 %v595
      %v813 = vunpack.c.l.b16 %v596
      %v814 = vunpack.c.l.b16 %v597
      %v815 = vunpack.c.l.b16 %v598
      %v816 = vunpack.c.l.b16 %v599
      %v817 = vunpack.c.l.b16 %v600
      %v818 = vunpack.c.l.b16 %v601
      %v819 = vunpack.c.l.b16 %v602
      %v820 = vunpack.c.l.b16 %v603
      %v821 = vunpack.c.l.b16 %v604
      %v822 = vunpack.c.l.b16 %v605
      %v823 = vunpack.c.l.b16 %v606
      %v824 = vunpack.c.l.b16 %v607
      %v825 = vunpack.c.l.b16 %v608
      %v826 = vunpack.c.l.b16 %v609
      %v827 = vunpack.c.l.b16 %v610
      %v828 = vunpack.c.l.b16 %v611
      %v829 = vunpack.c.l.b16 %v612
      %v830 = vunpack.c.l.b16 %v613
      %v831 = vunpack.c.l.b16 %v614
      %v832 = vunpack.c.l.b16 %v615
      %v833 = vunpack.c.l.b16 %v616
      %v834 = vunpack.c.l.b16 %v617
      %v835 = vunpack.c.l.b16 %v618
      %v836 = vunpack.c.l.b16 %v619
      %v837 = vunpack.c.l.b16 %v620
      %v838 = vunpack.c.l.b16 %v621
      %v839 = vunpack.c.l.b16 %v622
      %v840 = vunpack.c.l.b16 %v623
      %v841 = vunpack.c.l.b16 %v624
      %v842 = vunpack.c.l.b16 %v625
      %v843 = vunpack.c.l.b16 %v626
      %v844 = vunpack.c.l.b16 %v627
      %v845 = vunpack.c.l.b16 %v628
      %v846 = vunpack.c.l.b16 %v629
      %v847 = vunpack.c.l.b16 %v630
      %v848 = vunpack.c.l.b16 %v631
      %v849 = vunpack.c.l.b16 %v632
      %v850 = vunpack.c.l.b16 %v633
      %v851 = vunpack.c.l.b16 %v634
      %v852 = vunpack.c.l.b16 %v635
      %v853 = vunpack.c.l.b16 %v636
      %v854 = vunpack.c.l.b16 %v637
      %v855 = vpack.c.b16 %v760, %v759
      %v856 = vpack.c.b16 %v762, %v761
      %v857 = vpack.c.b16 %v764, %v763
      %v858 = vpack.c.b16 %v766, %v765
      %v859 = vpack.c.b16 %v768, %v767
      %v860 = vpack.c.b16 %v770, %v769
      %v861 = vpack.c.b16 %v772, %v771
      %v862 = vpack.c.b16 %v774, %v773
      %v863 = vpack.c.b16 %v776, %v775
      %v864 = vpack.c.b16 %v778, %v777
      %v865 = vpack.c.b16 %v780, %v779
      %v866 = vpack.c.b16 %v782, %v781
      %v867 = vpack.c.b16 %v784, %v783
      %v868 = vpack.c.b16 %v786, %v785
      %v869 = vpack.c.b16 %v788, %v787
      %v870 = vpack.c.b16 %v790, %v789
      %v871 = vpack.c.b16 %v792, %v791
      %v872 = vpack.c.b16 %v794, %v793
      %v873 = vpack.c.b16 %v796, %v795
      %v874 = vpack.c.b16 %v798, %v797
      %v875 = vpack.c.b16 %v800, %v799
      %v876 = vpack.c.b16 %v802, %v801
      %v877 = vpack.c.b16 %v804, %v803
      %v878 = vpack.c.b16 %v806, %v805
      %v879 = vpack.c.b16 %v808, %v807
      %v880 = vpack.c.b16 %v810, %v809
      %v881 = vpack.c.b16 %v812, %v811
      %v882 = vpack.c.b16 %v814, %v813
      %v883 = vpack.c.b16 %v816, %v815
      %v884 = vpack.c.b16 %v818, %v817
      %v885 = vpack.c.b16 %v820, %v819
      %v886 = vpack.c.b16 %v822, %v821
      %v887 = vpack.c.b16 %v824, %v823
      %v888 = vpack.c.b16 %v826, %v825
      %v889 = vpack.c.b16 %v828, %v827
      %v890 = vpack.c.b16 %v830, %v829
      %v891 = vpack.c.b16 %v832, %v831
      %v892 = vpack.c.b16 %v834, %v833
      %v893 = vpack.c.b16 %v836, %v835
      %v894 = vpack.c.b16 %v838, %v837
      %v895 = vpack.c.b16 %v840, %v839
      %v896 = vpack.c.b16 %v842, %v841
      %v897 = vpack.c.b16 %v844, %v843
      %v898 = vpack.c.b16 %v846, %v845
      %v899 = vpack.c.b16 %v848, %v847
      %v900 = vpack.c.b16 %v850, %v849
      %v901 = vpack.c.b16 %v852, %v851
      %v902 = vpack.c.b16 %v854, %v853
      %951 = vmatpush.bf16.msra.mxu0 %v862
      %952 = vmatpush.bf16.msra.mxu0 %v861
      %953 = vmatpush.bf16.msra.mxu0 %v860
      %954 = vmatpush.bf16.msra.mxu0 %v859
      %955 = vmatpush.bf16.msra.mxu0 %v858
      %956 = vmatpush.bf16.msra.mxu0 %v857
      %957 = vmatpush.bf16.msra.mxu0 %v856
      %958 = vmatpush.bf16.msra.mxu0 %v855
      %959 = vmatmul.bf16.gmra.mxu0 %v651
      %v960 = vpop.f32.mrf.mxu0
      %v961 = vadd.f32 %v640, %v960
      %v962 = vpop.f32.mrf.mxu0
      %963 = vdwg.mxu0
      %964 = vmatpush.bf16.msra.mxu0 %v870
      %965 = vmatpush.bf16.msra.mxu0 %v869
      %966 = vmatpush.bf16.msra.mxu0 %v868
      %967 = vmatpush.bf16.msra.mxu0 %v867
      %968 = vmatpush.bf16.msra.mxu0 %v866
      %969 = vmatpush.bf16.msra.mxu0 %v865
      %970 = vmatpush.bf16.msra.mxu0 %v864
      %971 = vmatpush.bf16.msra.mxu0 %v863
      %972 = vmatmul.bf16.gmra.mxu0 %v652
      %v973 = vpop.f32.mrf.mxu0
      %v974 = vadd.f32 %v961, %v973
      %v975 = vpop.f32.mrf.mxu0
      %976 = vdwg.mxu0
      %977 = vmatpush.bf16.msra.mxu0 %v878
      %978 = vmatpush.bf16.msra.mxu0 %v877
      %979 = vmatpush.bf16.msra.mxu0 %v876
      %980 = vmatpush.bf16.msra.mxu0 %v875
      %981 = vmatpush.bf16.msra.mxu0 %v874
      %982 = vmatpush.bf16.msra.mxu0 %v873
      %983 = vmatpush.bf16.msra.mxu0 %v872
      %984 = vmatpush.bf16.msra.mxu0 %v871
      %985 = vmatmul.bf16.gmra.mxu0 %v653
      %v986 = vpop.f32.mrf.mxu0
      %v987 = vadd.f32 %v974, %v986
      %v988 = vpop.f32.mrf.mxu0
      %989 = vdwg.mxu0
      %990 = vmatpush.bf16.msra.mxu0 %v886
      %991 = vmatpush.bf16.msra.mxu0 %v885
      %992 = vmatpush.bf16.msra.mxu0 %v884
      %993 = vmatpush.bf16.msra.mxu0 %v883
      %994 = vmatpush.bf16.msra.mxu0 %v882
      %995 = vmatpush.bf16.msra.mxu0 %v881
      %996 = vmatpush.bf16.msra.mxu0 %v880
      %997 = vmatpush.bf16.msra.mxu0 %v879
      %998 = vmatmul.bf16.gmra.mxu0 %v654
      %v999 = vpop.f32.mrf.mxu0
      %v1000 = vadd.f32 %v987, %v999
      %v1001 = vpop.f32.mrf.mxu0
      %1002 = vdwg.mxu0
      %1003 = vmatpush.bf16.msra.mxu0 %v894
      %1004 = vmatpush.bf16.msra.mxu0 %v893
      %1005 = vmatpush.bf16.msra.mxu0 %v892
      %1006 = vmatpush.bf16.msra.mxu0 %v891
      %1007 = vmatpush.bf16.msra.mxu0 %v890
      %1008 = vmatpush.bf16.msra.mxu0 %v889
      %1009 = vmatpush.bf16.msra.mxu0 %v888
      %1010 = vmatpush.bf16.msra.mxu0 %v887
      %1011 = vmatmul.bf16.gmra.mxu0 %v655
      %v1012 = vpop.f32.mrf.mxu0
      %v1013 = vadd.f32 %v1000, %v1012
      %v1014 = vpop.f32.mrf.mxu0
      %1015 = vdwg.mxu0
      %1016 = vmatpush.bf16.msra.mxu0 %v902
      %1017 = vmatpush.bf16.msra.mxu0 %v901
      %1018 = vmatpush.bf16.msra.mxu0 %v900
      %1019 = vmatpush.bf16.msra.mxu0 %v899
      %1020 = vmatpush.bf16.msra.mxu0 %v898
      %1021 = vmatpush.bf16.msra.mxu0 %v897
      %1022 = vmatpush.bf16.msra.mxu0 %v896
      %1023 = vmatpush.bf16.msra.mxu0 %v895
      %1024 = vmatmul.bf16.gmra.mxu0 %v656
      %v1025 = vpop.f32.mrf.mxu0
      %v1026 = vadd.f32 %v1013, %v1025
      %v1027 = vpop.f32.mrf.mxu0
      %1028 = vdwg.mxu0
      %v1029 = vpack.c.bf16 %v1026, %v1026
      %v1030 = vld [vmem:[%s513] sm:$0xf]
      %v1031 = vld [vmem:[%s513 + $0x4] sm:$0xf]
      %v1032 = vld [vmem:[%s513 + $0x8] sm:$0xf]
      %v1033 = vld [vmem:[%s513 + $0xc] sm:$0xf]
      %v1034 = vld [vmem:[%s513 + $0x10] sm:$0xf]
      %v1035 = vld [vmem:[%s513 + $0x14] sm:$0xf]
      %v1036 = vld [vmem:[%s513 + $0x18] sm:$0xf]
      %v1037 = vld [vmem:[%s513 + $0x1c] sm:$0xf]
      %v1038 = vld [vmem:[%s513 + $0x20] sm:$0xf]
      %v1039 = vld [vmem:[%s513 + $0x24] sm:$0xf]
      %v1040 = vld [vmem:[%s513 + $0x28] sm:$0xf]
      %v1041 = vld [vmem:[%s513 + $0x2c] sm:$0xf]
      %v1042 = vld [vmem:[%s513 + $0x30] sm:$0xf]
      %v1043 = vld [vmem:[%s513 + $0x34] sm:$0xf]
      %v1044 = vld [vmem:[%s513 + $0x38] sm:$0xf]
      %v1045 = vld [vmem:[%s513 + $0x3c] sm:$0xf]
      %v1046 = vld [vmem:[%s516] sm:$0x1]
      %v1048 = vperm.slane %v1046, 0
      %v1066 = vunpack.c.l.b16 %v1030
      %v1067 = vunpack.c.l.b16 %v1031
      %v1068 = vunpack.c.l.b16 %v1032
      %v1069 = vunpack.c.l.b16 %v1033
      %v1070 = vunpack.c.l.b16 %v1034
      %v1071 = vunpack.c.l.b16 %v1035
      %v1072 = vunpack.c.l.b16 %v1036
      %v1073 = vunpack.c.l.b16 %v1037
      %v1074 = vunpack.c.l.b16 %v1038
      %v1075 = vunpack.c.l.b16 %v1039
      %v1076 = vunpack.c.l.b16 %v1040
      %v1077 = vunpack.c.l.b16 %v1041
      %v1078 = vunpack.c.l.b16 %v1042
      %v1079 = vunpack.c.l.b16 %v1043
      %v1080 = vunpack.c.l.b16 %v1044
      %v1081 = vunpack.c.l.b16 %v1045
      %v1082 = vpack.c.b16 %v1067, %v1066
      %v1083 = vpack.c.b16 %v1069, %v1068
      %v1084 = vpack.c.b16 %v1071, %v1070
      %v1085 = vpack.c.b16 %v1073, %v1072
      %v1086 = vpack.c.b16 %v1075, %v1074
      %v1087 = vpack.c.b16 %v1077, %v1076
      %v1088 = vpack.c.b16 %v1079, %v1078
      %v1089 = vpack.c.b16 %v1081, %v1080
      %1098 = vmatpush.bf16.msra.mxu0 %v1089
      %1099 = vmatpush.bf16.msra.mxu0 %v1088
      %1100 = vmatpush.bf16.msra.mxu0 %v1087
      %1101 = vmatpush.bf16.msra.mxu0 %v1086
      %1102 = vmatpush.bf16.msra.mxu0 %v1085
      %1103 = vmatpush.bf16.msra.mxu0 %v1084
      %1104 = vmatpush.bf16.msra.mxu0 %v1083
      %1105 = vmatpush.bf16.msra.mxu0 %v1082
      %1106 = vmatmul.bf16.gmra.mxu0 %v1029
      %v1107 = vpop.f32.mrf.mxu0
      %v1108 = vadd.f32 %v1048, %v1107
      %v1109 = vpop.f32.mrf.mxu0
      %1110 = vdwg.mxu0
      %v1111 = vmax.f32 %v1108, 0.0
      %v1112 = vpack.c.bf16 %v1111, %v1111
      %v1113 = vld [vmem:[%s521] sm:$0xf]
      %v1114 = vld [vmem:[%s521 + $0x4] sm:$0xf]
      %v1115 = vld [vmem:[%s521 + $0x8] sm:$0xf]
      %v1116 = vld [vmem:[%s521 + $0xc] sm:$0xf]
      %v1117 = vld [vmem:[%s521 + $0x10] sm:$0xf]
      %v1118 = vld [vmem:[%s521 + $0x14] sm:$0xf]
      %v1119 = vld [vmem:[%s521 + $0x18] sm:$0xf]
      %v1120 = vld [vmem:[%s521 + $0x1c] sm:$0xf]
      %v1121 = vld [vmem:[%s521 + $0x20] sm:$0xf]
      %v1122 = vld [vmem:[%s521 + $0x24] sm:$0xf]
      %v1123 = vld [vmem:[%s521 + $0x28] sm:$0xf]
      %v1124 = vld [vmem:[%s521 + $0x2c] sm:$0xf]
      %v1125 = vld [vmem:[%s521 + $0x30] sm:$0xf]
      %v1126 = vld [vmem:[%s521 + $0x34] sm:$0xf]
      %v1127 = vld [vmem:[%s521 + $0x38] sm:$0xf]
      %v1128 = vld [vmem:[%s521 + $0x3c] sm:$0xf]
      %v1129 = vld [vmem:[%s524] sm:$0x1]
      %v1131 = vperm.slane %v1129, 0
      %v1149 = vunpack.c.l.b16 %v1113
      %v1150 = vunpack.c.l.b16 %v1114
      %v1151 = vunpack.c.l.b16 %v1115
      %v1152 = vunpack.c.l.b16 %v1116
      %v1153 = vunpack.c.l.b16 %v1117
      %v1154 = vunpack.c.l.b16 %v1118
      %v1155 = vunpack.c.l.b16 %v1119
      %v1156 = vunpack.c.l.b16 %v1120
      %v1157 = vunpack.c.l.b16 %v1121
      %v1158 = vunpack.c.l.b16 %v1122
      %v1159 = vunpack.c.l.b16 %v1123
      %v1160 = vunpack.c.l.b16 %v1124
      %v1161 = vunpack.c.l.b16 %v1125
      %v1162 = vunpack.c.l.b16 %v1126
      %v1163 = vunpack.c.l.b16 %v1127
      %v1164 = vunpack.c.l.b16 %v1128
      %v1165 = vpack.c.b16 %v1150, %v1149
      %v1166 = vpack.c.b16 %v1152, %v1151
      %v1167 = vpack.c.b16 %v1154, %v1153
      %v1168 = vpack.c.b16 %v1156, %v1155
      %v1169 = vpack.c.b16 %v1158, %v1157
      %v1170 = vpack.c.b16 %v1160, %v1159
      %v1171 = vpack.c.b16 %v1162, %v1161
      %v1172 = vpack.c.b16 %v1164, %v1163
      %1181 = vmatpush.bf16.msra.mxu0 %v1172
      %1182 = vmatpush.bf16.msra.mxu0 %v1171
      %1183 = vmatpush.bf16.msra.mxu0 %v1170
      %1184 = vmatpush.bf16.msra.mxu0 %v1169
      %1185 = vmatpush.bf16.msra.mxu0 %v1168
      %1186 = vmatpush.bf16.msra.mxu0 %v1167
      %1187 = vmatpush.bf16.msra.mxu0 %v1166
      %1188 = vmatpush.bf16.msra.mxu0 %v1165
      %1189 = vmatmul.bf16.gmra.mxu0 %v1112
      %v1190 = vpop.f32.mrf.mxu0
      %v1191 = vadd.f32 %v1131, %v1190
      %v1192 = vpop.f32.mrf.mxu0
      %1193 = vdwg.mxu0
      %v1194 = vmul.f32 %v1191, %v1191
      %1195 = vadd.xlane.f32.xlu0 %v1194
      %v1196 = vpop.xlane.xlu0 %1195
      %v1197 = vmax.f32 %v1196, 1e-24
      %v1198 = vrsqrt.pop %v1197
      %v1199 = vmul.f32 %v1198, %v1197
      %v1200 = vmul.f32 %v1199, %v1198
      %v1201 = vmul.f32 0.5, %v1200
      %v1202 = vsub.f32 1.5, %v1201
      %v1203 = vmul.f32 %v1198, %v1202
      %vm1204 = vweird.f32 %v1197
      %vm1205 = vweird.f32 %v1198
      %vm1206 = vmor %vm1204, %vm1205
      %v1207 = vsel %vm1206, %v1198, %v1203
      %v1208 = vmul.f32 %v1191, %v1207
      %1209 = vst [vmem:[%s528] sm:$0xff] %v1208
      %p1210 = scmp.eq.s32.totalorder %s24, 0
      // Predicated region
      $region61: #{forward_mocov2.1} parent=59 // pred_check
        %p1211 = pneg %p1210
      $region62: #{forward_mocov2.1} parent=59 // pred_check_branch
        %1213 = sbr.rel (%p1211) target = $region64
      $region63: #{forward_mocov2.1} parent=59 // pred_region
        %v1214 = vld [vmem:[%s7] sm:$0xff]
        %v1215 = vld [vmem:[%s7 + $0x8] sm:$0xff]
        %v1216 = vld [vmem:[%s7 + $0x10] sm:$0xff]
        %v1217 = vld [vmem:[%s7 + $0x18] sm:$0xff]
        %v1218 = vld [vmem:[%s7 + $0x20] sm:$0xff]
        %v1219 = vld [vmem:[%s7 + $0x28] sm:$0xff]
        %v1220 = vld [vmem:[%s7 + $0x30] sm:$0xff]
        %v1221 = vld [vmem:[%s7 + $0x38] sm:$0xff]
        %v1222 = vld [vmem:[%s7 + $0x40] sm:$0xff]
        %v1223 = vld [vmem:[%s7 + $0x48] sm:$0xff]
        %v1224 = vld [vmem:[%s7 + $0x50] sm:$0xff]
        %v1225 = vld [vmem:[%s7 + $0x58] sm:$0xff]
        %v1226 = vld [vmem:[%s7 + $0x60] sm:$0xff]
        %v1227 = vld [vmem:[%s7 + $0x68] sm:$0xff]
        %v1228 = vld [vmem:[%s7 + $0x70] sm:$0xff]
        %v1229 = vld [vmem:[%s7 + $0x78] sm:$0xff]
        %v1230 = vld [vmem:[%s7 + $0x80] sm:$0xff]
        %v1231 = vld [vmem:[%s7 + $0x88] sm:$0xff]
        %v1232 = vld [vmem:[%s7 + $0x90] sm:$0xff]
        %v1233 = vld [vmem:[%s7 + $0x98] sm:$0xff]
        %v1234 = vld [vmem:[%s7 + $0xa0] sm:$0xff]
        %v1235 = vld [vmem:[%s7 + $0xa8] sm:$0xff]
        %v1236 = vld [vmem:[%s7 + $0xb0] sm:$0xff]
        %v1237 = vld [vmem:[%s7 + $0xb8] sm:$0xff]
        %v1238 = vld [vmem:[%s7 + $0xc0] sm:$0xff]
        %v1239 = vld [vmem:[%s7 + $0xc8] sm:$0xff]
        %v1240 = vld [vmem:[%s7 + $0xd0] sm:$0xff]
        %v1241 = vld [vmem:[%s7 + $0xd8] sm:$0xff]
        %v1242 = vld [vmem:[%s7 + $0xe0] sm:$0xff]
        %v1243 = vld [vmem:[%s7 + $0xe8] sm:$0xff]
        %v1244 = vld [vmem:[%s7 + $0xf0] sm:$0xff]
        %v1245 = vld [vmem:[%s7 + $0xf8] sm:$0xff]
        %v1246 = vld [vmem:[%s7 + $0x100] sm:$0xff]
        %v1247 = vld [vmem:[%s7 + $0x108] sm:$0xff]
        %v1248 = vld [vmem:[%s7 + $0x110] sm:$0xff]
        %v1249 = vld [vmem:[%s7 + $0x118] sm:$0xff]
        %v1250 = vld [vmem:[%s7 + $0x120] sm:$0xff]
        %v1251 = vld [vmem:[%s7 + $0x128] sm:$0xff]
        %v1252 = vld [vmem:[%s7 + $0x130] sm:$0xff]
        %v1253 = vld [vmem:[%s7 + $0x138] sm:$0xff]
        %v1254 = vld [vmem:[%s7 + $0x140] sm:$0xff]
        %v1255 = vld [vmem:[%s7 + $0x148] sm:$0xff]
        %v1256 = vld [vmem:[%s7 + $0x150] sm:$0xff]
        %v1257 = vld [vmem:[%s7 + $0x158] sm:$0xff]
        %v1258 = vld [vmem:[%s7 + $0x160] sm:$0xff]
        %v1259 = vld [vmem:[%s7 + $0x168] sm:$0xff]
        %v1260 = vld [vmem:[%s7 + $0x170] sm:$0xff]
        %v1261 = vld [vmem:[%s7 + $0x178] sm:$0xff]
        %v1262 = vld [vmem:[%s7 + $0x180] sm:$0xff]
        %v1263 = vld [vmem:[%s7 + $0x188] sm:$0xff]
        %v1264 = vld [vmem:[%s7 + $0x190] sm:$0xff]
        %v1265 = vld [vmem:[%s7 + $0x198] sm:$0xff]
        %v1266 = vld [vmem:[%s7 + $0x1a0] sm:$0xff]
        %v1267 = vld [vmem:[%s7 + $0x1a8] sm:$0xff]
        %v1268 = vld [vmem:[%s7 + $0x1b0] sm:$0xff]
        %v1269 = vld [vmem:[%s7 + $0x1b8] sm:$0xff]
        %v1270 = vld [vmem:[%s7 + $0x1c0] sm:$0xff]
        %v1271 = vld [vmem:[%s7 + $0x1c8] sm:$0xff]
        %v1272 = vld [vmem:[%s7 + $0x1d0] sm:$0xff]
        %v1273 = vld [vmem:[%s7 + $0x1d8] sm:$0xff]
        %v1274 = vld [vmem:[%s7 + $0x1e0] sm:$0xff]
        %v1275 = vld [vmem:[%s7 + $0x1e8] sm:$0xff]
        %v1276 = vld [vmem:[%s7 + $0x1f0] sm:$0xff]
        %v1277 = vld [vmem:[%s7 + $0x1f8] sm:$0xff]
        %v1278 = vld [vmem:[%s8] sm:$0xff]
        %v1280 = vperm.slane %v1278, 0
        %v1281 = vperm.slane %v1278, 1
        %v1282 = vperm.slane %v1278, 2
        %v1283 = vperm.slane %v1278, 3
        %v1284 = vperm.slane %v1278, 4
        %v1285 = vperm.slane %v1278, 5
        %v1286 = vperm.slane %v1278, 6
        %v1287 = vperm.slane %v1278, 7
        %v1360 = vunpack.c.l.b16 %v1214
        %v1361 = vunpack.c.h.b16 %v1214
        %v1362 = vunpack.c.l.b16 %v1215
        %v1363 = vunpack.c.h.b16 %v1215
        %v1364 = vunpack.c.l.b16 %v1216
        %v1365 = vunpack.c.h.b16 %v1216
        %v1366 = vunpack.c.l.b16 %v1217
        %v1367 = vunpack.c.h.b16 %v1217
        %v1368 = vunpack.c.l.b16 %v1218
        %v1369 = vunpack.c.h.b16 %v1218
        %v1370 = vunpack.c.l.b16 %v1219
        %v1371 = vunpack.c.h.b16 %v1219
        %v1372 = vunpack.c.l.b16 %v1220
        %v1373 = vunpack.c.h.b16 %v1220
        %v1374 = vunpack.c.l.b16 %v1221
        %v1375 = vunpack.c.h.b16 %v1221
        %v1376 = vunpack.c.l.b16 %v1222
        %v1377 = vunpack.c.h.b16 %v1222
        %v1378 = vunpack.c.l.b16 %v1223
        %v1379 = vunpack.c.h.b16 %v1223
        %v1380 = vunpack.c.l.b16 %v1224
        %v1381 = vunpack.c.h.b16 %v1224
        %v1382 = vunpack.c.l.b16 %v1225
        %v1383 = vunpack.c.h.b16 %v1225
        %v1384 = vunpack.c.l.b16 %v1226
        %v1385 = vunpack.c.h.b16 %v1226
        %v1386 = vunpack.c.l.b16 %v1227
        %v1387 = vunpack.c.h.b16 %v1227
        %v1388 = vunpack.c.l.b16 %v1228
        %v1389 = vunpack.c.h.b16 %v1228
        %v1390 = vunpack.c.l.b16 %v1229
        %v1391 = vunpack.c.h.b16 %v1229
        %v1392 = vunpack.c.l.b16 %v1230
        %v1393 = vunpack.c.h.b16 %v1230
        %v1394 = vunpack.c.l.b16 %v1231
        %v1395 = vunpack.c.h.b16 %v1231
        %v1396 = vunpack.c.l.b16 %v1232
        %v1397 = vunpack.c.h.b16 %v1232
        %v1398 = vunpack.c.l.b16 %v1233
        %v1399 = vunpack.c.h.b16 %v1233
        %v1400 = vunpack.c.l.b16 %v1234
        %v1401 = vunpack.c.h.b16 %v1234
        %v1402 = vunpack.c.l.b16 %v1235
        %v1403 = vunpack.c.h.b16 %v1235
        %v1404 = vunpack.c.l.b16 %v1236
        %v1405 = vunpack.c.h.b16 %v1236
        %v1406 = vunpack.c.l.b16 %v1237
        %v1407 = vunpack.c.h.b16 %v1237
        %v1408 = vunpack.c.l.b16 %v1238
        %v1409 = vunpack.c.h.b16 %v1238
        %v1410 = vunpack.c.l.b16 %v1239
        %v1411 = vunpack.c.h.b16 %v1239
        %v1412 = vunpack.c.l.b16 %v1240
        %v1413 = vunpack.c.h.b16 %v1240
        %v1414 = vunpack.c.l.b16 %v1241
        %v1415 = vunpack.c.h.b16 %v1241
        %v1416 = vunpack.c.l.b16 %v1242
        %v1417 = vunpack.c.h.b16 %v1242
        %v1418 = vunpack.c.l.b16 %v1243
        %v1419 = vunpack.c.h.b16 %v1243
        %v1420 = vunpack.c.l.b16 %v1244
        %v1421 = vunpack.c.h.b16 %v1244
        %v1422 = vunpack.c.l.b16 %v1245
        %v1423 = vunpack.c.h.b16 %v1245
        %v1424 = vunpack.c.l.b16 %v1246
        %v1425 = vunpack.c.h.b16 %v1246
        %v1426 = vunpack.c.l.b16 %v1247
        %v1427 = vunpack.c.h.b16 %v1247
        %v1428 = vunpack.c.l.b16 %v1248
        %v1429 = vunpack.c.h.b16 %v1248
        %v1430 = vunpack.c.l.b16 %v1249
        %v1431 = vunpack.c.h.b16 %v1249
        %v1432 = vunpack.c.l.b16 %v1250
        %v1433 = vunpack.c.h.b16 %v1250
        %v1434 = vunpack.c.l.b16 %v1251
        %v1435 = vunpack.c.h.b16 %v1251
        %v1436 = vunpack.c.l.b16 %v1252
        %v1437 = vunpack.c.h.b16 %v1252
        %v1438 = vunpack.c.l.b16 %v1253
        %v1439 = vunpack.c.h.b16 %v1253
        %v1440 = vunpack.c.l.b16 %v1254
        %v1441 = vunpack.c.h.b16 %v1254
        %v1442 = vunpack.c.l.b16 %v1255
        %v1443 = vunpack.c.h.b16 %v1255
        %v1444 = vunpack.c.l.b16 %v1256
        %v1445 = vunpack.c.h.b16 %v1256
        %v1446 = vunpack.c.l.b16 %v1257
        %v1447 = vunpack.c.h.b16 %v1257
        %v1448 = vunpack.c.l.b16 %v1258
        %v1449 = vunpack.c.h.b16 %v1258
        %v1450 = vunpack.c.l.b16 %v1259
        %v1451 = vunpack.c.h.b16 %v1259
        %v1452 = vunpack.c.l.b16 %v1260
        %v1453 = vunpack.c.h.b16 %v1260
        %v1454 = vunpack.c.l.b16 %v1261
        %v1455 = vunpack.c.h.b16 %v1261
        %v1456 = vunpack.c.l.b16 %v1262
        %v1457 = vunpack.c.h.b16 %v1262
        %v1458 = vunpack.c.l.b16 %v1263
        %v1459 = vunpack.c.h.b16 %v1263
        %v1460 = vunpack.c.l.b16 %v1264
        %v1461 = vunpack.c.h.b16 %v1264
        %v1462 = vunpack.c.l.b16 %v1265
        %v1463 = vunpack.c.h.b16 %v1265
        %v1464 = vunpack.c.l.b16 %v1266
        %v1465 = vunpack.c.h.b16 %v1266
        %v1466 = vunpack.c.l.b16 %v1267
        %v1467 = vunpack.c.h.b16 %v1267
        %v1468 = vunpack.c.l.b16 %v1268
        %v1469 = vunpack.c.h.b16 %v1268
        %v1470 = vunpack.c.l.b16 %v1269
        %v1471 = vunpack.c.h.b16 %v1269
        %v1472 = vunpack.c.l.b16 %v1270
        %v1473 = vunpack.c.h.b16 %v1270
        %v1474 = vunpack.c.l.b16 %v1271
        %v1475 = vunpack.c.h.b16 %v1271
        %v1476 = vunpack.c.l.b16 %v1272
        %v1477 = vunpack.c.h.b16 %v1272
        %v1478 = vunpack.c.l.b16 %v1273
        %v1479 = vunpack.c.h.b16 %v1273
        %v1480 = vunpack.c.l.b16 %v1274
        %v1481 = vunpack.c.h.b16 %v1274
        %v1482 = vunpack.c.l.b16 %v1275
        %v1483 = vunpack.c.h.b16 %v1275
        %v1484 = vunpack.c.l.b16 %v1276
        %v1485 = vunpack.c.h.b16 %v1276
        %v1486 = vunpack.c.l.b16 %v1277
        %v1487 = vunpack.c.h.b16 %v1277
        %v1488 = vpack.c.b16 %v1368, %v1360
        %v1489 = vpack.c.b16 %v1369, %v1361
        %v1490 = vpack.c.b16 %v1370, %v1362
        %v1491 = vpack.c.b16 %v1371, %v1363
        %v1492 = vpack.c.b16 %v1372, %v1364
        %v1493 = vpack.c.b16 %v1373, %v1365
        %v1494 = vpack.c.b16 %v1374, %v1366
        %v1495 = vpack.c.b16 %v1375, %v1367
        %v1496 = vpack.c.b16 %v1384, %v1376
        %v1497 = vpack.c.b16 %v1385, %v1377
        %v1498 = vpack.c.b16 %v1386, %v1378
        %v1499 = vpack.c.b16 %v1387, %v1379
        %v1500 = vpack.c.b16 %v1388, %v1380
        %v1501 = vpack.c.b16 %v1389, %v1381
        %v1502 = vpack.c.b16 %v1390, %v1382
        %v1503 = vpack.c.b16 %v1391, %v1383
        %v1504 = vpack.c.b16 %v1400, %v1392
        %v1505 = vpack.c.b16 %v1401, %v1393
        %v1506 = vpack.c.b16 %v1402, %v1394
        %v1507 = vpack.c.b16 %v1403, %v1395
        %v1508 = vpack.c.b16 %v1404, %v1396
        %v1509 = vpack.c.b16 %v1405, %v1397
        %v1510 = vpack.c.b16 %v1406, %v1398
        %v1511 = vpack.c.b16 %v1407, %v1399
        %v1512 = vpack.c.b16 %v1416, %v1408
        %v1513 = vpack.c.b16 %v1417, %v1409
        %v1514 = vpack.c.b16 %v1418, %v1410
        %v1515 = vpack.c.b16 %v1419, %v1411
        %v1516 = vpack.c.b16 %v1420, %v1412
        %v1517 = vpack.c.b16 %v1421, %v1413
        %v1518 = vpack.c.b16 %v1422, %v1414
        %v1519 = vpack.c.b16 %v1423, %v1415
        %v1520 = vpack.c.b16 %v1432, %v1424
        %v1521 = vpack.c.b16 %v1433, %v1425
        %v1522 = vpack.c.b16 %v1434, %v1426
        %v1523 = vpack.c.b16 %v1435, %v1427
        %v1524 = vpack.c.b16 %v1436, %v1428
        %v1525 = vpack.c.b16 %v1437, %v1429
        %v1526 = vpack.c.b16 %v1438, %v1430
        %v1527 = vpack.c.b16 %v1439, %v1431
        %v1528 = vpack.c.b16 %v1448, %v1440
        %v1529 = vpack.c.b16 %v1449, %v1441
        %v1530 = vpack.c.b16 %v1450, %v1442
        %v1531 = vpack.c.b16 %v1451, %v1443
        %v1532 = vpack.c.b16 %v1452, %v1444
        %v1533 = vpack.c.b16 %v1453, %v1445
        %v1534 = vpack.c.b16 %v1454, %v1446
        %v1535 = vpack.c.b16 %v1455, %v1447
        %v1536 = vpack.c.b16 %v1464, %v1456
        %v1537 = vpack.c.b16 %v1465, %v1457
        %v1538 = vpack.c.b16 %v1466, %v1458
        %v1539 = vpack.c.b16 %v1467, %v1459
        %v1540 = vpack.c.b16 %v1468, %v1460
        %v1541 = vpack.c.b16 %v1469, %v1461
        %v1542 = vpack.c.b16 %v1470, %v1462
        %v1543 = vpack.c.b16 %v1471, %v1463
        %v1544 = vpack.c.b16 %v1480, %v1472
        %v1545 = vpack.c.b16 %v1481, %v1473
        %v1546 = vpack.c.b16 %v1482, %v1474
        %v1547 = vpack.c.b16 %v1483, %v1475
        %v1548 = vpack.c.b16 %v1484, %v1476
        %v1549 = vpack.c.b16 %v1485, %v1477
        %v1550 = vpack.c.b16 %v1486, %v1478
        %v1551 = vpack.c.b16 %v1487, %v1479
        %1616 = vmatpush.bf16.msra.mxu0 %v1544
        %1617 = vmatpush.bf16.msra.mxu0 %v1536
        %1618 = vmatpush.bf16.msra.mxu0 %v1528
        %1619 = vmatpush.bf16.msra.mxu0 %v1520
        %1620 = vmatpush.bf16.msra.mxu0 %v1512
        %1621 = vmatpush.bf16.msra.mxu0 %v1504
        %1622 = vmatpush.bf16.msra.mxu0 %v1496
        %1623 = vmatpush.bf16.msra.mxu0 %v1488
        %1624 = vmatmul.bf16.gmra.mxu0 %v1029
        %v1625 = vpop.f32.mrf.mxu0
        %v1626 = vadd.f32 %v1280, %v1625
        %v1627 = vpop.f32.mrf.mxu0
        %1628 = vdwg.mxu0
        %1629 = vmatpush.bf16.msra.mxu0 %v1545
        %1630 = vmatpush.bf16.msra.mxu0 %v1537
        %1631 = vmatpush.bf16.msra.mxu0 %v1529
        %1632 = vmatpush.bf16.msra.mxu0 %v1521
        %1633 = vmatpush.bf16.msra.mxu0 %v1513
        %1634 = vmatpush.bf16.msra.mxu0 %v1505
        %1635 = vmatpush.bf16.msra.mxu0 %v1497
        %1636 = vmatpush.bf16.msra.mxu0 %v1489
        %1637 = vmatmul.bf16.gmra.mxu0 %v1029
        %v1638 = vpop.f32.mrf.mxu0
        %v1639 = vadd.f32 %v1281, %v1638
        %v1640 = vpop.f32.mrf.mxu0
        %1641 = vdwg.mxu0
        %1642 = vmatpush.bf16.msra.mxu0 %v1546
        %1643 = vmatpush.bf16.msra.mxu0 %v1538
        %1644 = vmatpush.bf16.msra.mxu0 %v1530
        %1645 = vmatpush.bf16.msra.mxu0 %v1522
        %1646 = vmatpush.bf16.msra.mxu0 %v1514
        %1647 = vmatpush.bf16.msra.mxu0 %v1506
        %1648 = vmatpush.bf16.msra.mxu0 %v1498
        %1649 = vmatpush.bf16.msra.mxu0 %v1490
        %1650 = vmatmul.bf16.gmra.mxu0 %v1029
        %v1651 = vpop.f32.mrf.mxu0
        %v1652 = vadd.f32 %v1282, %v1651
        %v1653 = vpop.f32.mrf.mxu0
        %1654 = vdwg.mxu0
        %1655 = vmatpush.bf16.msra.mxu0 %v1547
        %1656 = vmatpush.bf16.msra.mxu0 %v1539
        %1657 = vmatpush.bf16.msra.mxu0 %v1531
        %1658 = vmatpush.bf16.msra.mxu0 %v1523
        %1659 = vmatpush.bf16.msra.mxu0 %v1515
        %1660 = vmatpush.bf16.msra.mxu0 %v1507
        %1661 = vmatpush.bf16.msra.mxu0 %v1499
        %1662 = vmatpush.bf16.msra.mxu0 %v1491
        %1663 = vmatmul.bf16.gmra.mxu0 %v1029
        %v1664 = vpop.f32.mrf.mxu0
        %v1665 = vadd.f32 %v1283, %v1664
        %v1666 = vpop.f32.mrf.mxu0
        %1667 = vdwg.mxu0
        %1668 = vmatpush.bf16.msra.mxu0 %v1548
        %1669 = vmatpush.bf16.msra.mxu0 %v1540
        %1670 = vmatpush.bf16.msra.mxu0 %v1532
        %1671 = vmatpush.bf16.msra.mxu0 %v1524
        %1672 = vmatpush.bf16.msra.mxu0 %v1516
        %1673 = vmatpush.bf16.msra.mxu0 %v1508
        %1674 = vmatpush.bf16.msra.mxu0 %v1500
        %1675 = vmatpush.bf16.msra.mxu0 %v1492
        %1676 = vmatmul.bf16.gmra.mxu0 %v1029
        %v1677 = vpop.f32.mrf.mxu0
        %v1678 = vadd.f32 %v1284, %v1677
        %v1679 = vpop.f32.mrf.mxu0
        %1680 = vdwg.mxu0
        %1681 = vmatpush.bf16.msra.mxu0 %v1549
        %1682 = vmatpush.bf16.msra.mxu0 %v1541
        %1683 = vmatpush.bf16.msra.mxu0 %v1533
        %1684 = vmatpush.bf16.msra.mxu0 %v1525
        %1685 = vmatpush.bf16.msra.mxu0 %v1517
        %1686 = vmatpush.bf16.msra.mxu0 %v1509
        %1687 = vmatpush.bf16.msra.mxu0 %v1501
        %1688 = vmatpush.bf16.msra.mxu0 %v1493
        %1689 = vmatmul.bf16.gmra.mxu0 %v1029
        %v1690 = vpop.f32.mrf.mxu0
        %v1691 = vadd.f32 %v1285, %v1690
        %v1692 = vpop.f32.mrf.mxu0
        %1693 = vdwg.mxu0
        %1694 = vmatpush.bf16.msra.mxu0 %v1550
        %1695 = vmatpush.bf16.msra.mxu0 %v1542
        %1696 = vmatpush.bf16.msra.mxu0 %v1534
        %1697 = vmatpush.bf16.msra.mxu0 %v1526
        %1698 = vmatpush.bf16.msra.mxu0 %v1518
        %1699 = vmatpush.bf16.msra.mxu0 %v1510
        %1700 = vmatpush.bf16.msra.mxu0 %v1502
        %1701 = vmatpush.bf16.msra.mxu0 %v1494
        %1702 = vmatmul.bf16.gmra.mxu0 %v1029
        %v1703 = vpop.f32.mrf.mxu0
        %v1704 = vadd.f32 %v1286, %v1703
        %v1705 = vpop.f32.mrf.mxu0
        %1706 = vdwg.mxu0
        %1707 = vmatpush.bf16.msra.mxu0 %v1551
        %1708 = vmatpush.bf16.msra.mxu0 %v1543
        %1709 = vmatpush.bf16.msra.mxu0 %v1535
        %1710 = vmatpush.bf16.msra.mxu0 %v1527
        %1711 = vmatpush.bf16.msra.mxu0 %v1519
        %1712 = vmatpush.bf16.msra.mxu0 %v1511
        %1713 = vmatpush.bf16.msra.mxu0 %v1503
        %1714 = vmatpush.bf16.msra.mxu0 %v1495
        %1715 = vmatmul.bf16.gmra.mxu0 %v1029
        %v1716 = vpop.f32.mrf.mxu0
        %v1717 = vadd.f32 %v1287, %v1716
        %v1718 = vpop.f32.mrf.mxu0
        %1719 = vdwg.mxu0
        %1720 = vst [vmem:[%s533] sm:$0xff] %v1626
        %1721 = vst [vmem:[%s533 + $0x8] sm:$0xff] %v1639
        %1722 = vst [vmem:[%s533 + $0x10] sm:$0xff] %v1652
        %1723 = vst [vmem:[%s533 + $0x18] sm:$0xff] %v1665
        %1724 = vst [vmem:[%s533 + $0x20] sm:$0xff] %v1678
        %1725 = vst [vmem:[%s533 + $0x28] sm:$0xff] %v1691
        %1726 = vst [vmem:[%s533 + $0x30] sm:$0xff] %v1704
        %1727 = vst [vmem:[%s533 + $0x38] sm:$0xff] %v1717
        %v1728 = vmul.f32 %v1208, 14.285714
        %v1729 = vpack.c.bf16 %v1728, %v1728
        %v1730 = vld [vmem:[%s9] sm:$0xff]
        %v1731 = vld [vmem:[%s9 + $0x8] sm:$0xff]
        %v1732 = vld [vmem:[%s9 + $0x10] sm:$0xff]
        %v1733 = vld [vmem:[%s9 + $0x18] sm:$0xff]
        %v1734 = vld [vmem:[%s9 + $0x20] sm:$0xff]
        %v1735 = vld [vmem:[%s9 + $0x28] sm:$0xff]
        %v1736 = vld [vmem:[%s9 + $0x30] sm:$0xff]
        %v1737 = vld [vmem:[%s9 + $0x38] sm:$0xff]
        %v1738 = vld [vmem:[%s9 + $0x40] sm:$0xff]
        %v1739 = vld [vmem:[%s9 + $0x48] sm:$0xff]
        %v1740 = vld [vmem:[%s9 + $0x50] sm:$0xff]
        %v1741 = vld [vmem:[%s9 + $0x58] sm:$0xff]
        %v1742 = vld [vmem:[%s9 + $0x60] sm:$0xff]
        %v1743 = vld [vmem:[%s9 + $0x68] sm:$0xff]
        %v1744 = vld [vmem:[%s9 + $0x70] sm:$0xff]
        %v1745 = vld [vmem:[%s9 + $0x78] sm:$0xff]
        %v1762 = vunpack.c.l.b16 %v1730
        %v1763 = vunpack.c.h.b16 %v1730
        %v1764 = vunpack.c.l.b16 %v1731
        %v1765 = vunpack.c.h.b16 %v1731
        %v1766 = vunpack.c.l.b16 %v1732
        %v1767 = vunpack.c.h.b16 %v1732
        %v1768 = vunpack.c.l.b16 %v1733
        %v1769 = vunpack.c.h.b16 %v1733
        %v1770 = vunpack.c.l.b16 %v1734
        %v1771 = vunpack.c.h.b16 %v1734
        %v1772 = vunpack.c.l.b16 %v1735
        %v1773 = vunpack.c.h.b16 %v1735
        %v1774 = vunpack.c.l.b16 %v1736
        %v1775 = vunpack.c.h.b16 %v1736
        %v1776 = vunpack.c.l.b16 %v1737
        %v1777 = vunpack.c.h.b16 %v1737
        %v1778 = vunpack.c.l.b16 %v1738
        %v1779 = vunpack.c.h.b16 %v1738
        %v1780 = vunpack.c.l.b16 %v1739
        %v1781 = vunpack.c.h.b16 %v1739
        %v1782 = vunpack.c.l.b16 %v1740
        %v1783 = vunpack.c.h.b16 %v1740
        %v1784 = vunpack.c.l.b16 %v1741
        %v1785 = vunpack.c.h.b16 %v1741
        %v1786 = vunpack.c.l.b16 %v1742
        %v1787 = vunpack.c.h.b16 %v1742
        %v1788 = vunpack.c.l.b16 %v1743
        %v1789 = vunpack.c.h.b16 %v1743
        %v1790 = vunpack.c.l.b16 %v1744
        %v1791 = vunpack.c.h.b16 %v1744
        %v1792 = vunpack.c.l.b16 %v1745
        %v1793 = vunpack.c.h.b16 %v1745
        %v1794 = vpack.c.b16 %v1764, %v1762
        %v1795 = vpack.c.b16 %v1765, %v1763
        %v1796 = vpack.c.b16 %v1768, %v1766
        %v1797 = vpack.c.b16 %v1769, %v1767
        %v1798 = vpack.c.b16 %v1772, %v1770
        %v1799 = vpack.c.b16 %v1773, %v1771
        %v1800 = vpack.c.b16 %v1776, %v1774
        %v1801 = vpack.c.b16 %v1777, %v1775
        %v1802 = vpack.c.b16 %v1780, %v1778
        %v1803 = vpack.c.b16 %v1781, %v1779
        %v1804 = vpack.c.b16 %v1784, %v1782
        %v1805 = vpack.c.b16 %v1785, %v1783
        %v1806 = vpack.c.b16 %v1788, %v1786
        %v1807 = vpack.c.b16 %v1789, %v1787
        %v1808 = vpack.c.b16 %v1792, %v1790
        %v1809 = vpack.c.b16 %v1793, %v1791
        %1826 = vmatpush.bf16.msra.mxu0 %v1808
        %1827 = vmatpush.bf16.msra.mxu0 %v1806
        %1828 = vmatpush.bf16.msra.mxu0 %v1804
        %1829 = vmatpush.bf16.msra.mxu0 %v1802
        %1830 = vmatpush.bf16.msra.mxu0 %v1800
        %1831 = vmatpush.bf16.msra.mxu0 %v1798
        %1832 = vmatpush.bf16.msra.mxu0 %v1796
        %1833 = vmatpush.bf16.msra.mxu0 %v1794
        %1834 = vmatmul.bf16.gmra.mxu0 %v1729
        %v1835 = vpop.f32.mrf.mxu0
        %v1836 = vadd.f32 0.0, %v1835
        %v1837 = vpop.f32.mrf.mxu0
        %1838 = vdwg.mxu0
        %1839 = vmatpush.bf16.msra.mxu0 %v1809
        %1840 = vmatpush.bf16.msra.mxu0 %v1807
        %1841 = vmatpush.bf16.msra.mxu0 %v1805
        %1842 = vmatpush.bf16.msra.mxu0 %v1803
        %1843 = vmatpush.bf16.msra.mxu0 %v1801
        %1844 = vmatpush.bf16.msra.mxu0 %v1799
        %1845 = vmatpush.bf16.msra.mxu0 %v1797
        %1846 = vmatpush.bf16.msra.mxu0 %v1795
        %1847 = vmatmul.bf16.gmra.mxu0 %v1729
        %v1848 = vpop.f32.mrf.mxu0
        %v1849 = vadd.f32 0.0, %v1848
        %v1850 = vpop.f32.mrf.mxu0
        %1851 = vdwg.mxu0
        %1852 = vst [vmem:[%s538] sm:$0xff] %v1836
        %1853 = vst [vmem:[%s538 + $0x8] sm:$0xff] %v1849
      $region64: #{forward_mocov2.1} parent=59 // pred_fallthru
        _
      %p1854 = scmp.lt.s32.totalorder %s24, 1
      %s1855 = scalar_select %p1854, %s24, 1
      %s1856 = smul.addr %s1855, 8
      %s1857 = scalar_lea.vmem %s10, %s1856
      %p1858 = scmp.lt.s32.totalorder %s24, 1
      %s1859 = scalar_select %p1858, %s24, 1
      %s1860 = smul.addr %s1859, 8
      %s1861 = smul.addr %s1860, 8
      %s1862 = scalar_lea.vmem %s11, %s1861
      %p1863 = scmp.lt.s32.totalorder %s24, 1
      %s1864 = scalar_select %p1863, %s24, 1
      %s1865 = smul.addr %s1864, 2
      %s1866 = smul.addr %s1865, 8
      %s1867 = scalar_lea.vmem %s12, %s1866
      // Predicated region
      $region65: #{forward_mocov2.1} parent=59 // pred_check
        %p1868 = pneg %p287
      $region66: #{forward_mocov2.1} parent=59 // pred_check_branch
        %1870 = sbr.rel (%p1868) target = $region68
      $region67: #{forward_mocov2.1} parent=59 // pred_region
        _
      $region68: #{forward_mocov2.1} parent=59 // pred_fallthru
        _
      // Predicated region
      $region69: #{forward_mocov2.1} parent=59 // pred_check
        %p1871 = pneg %p313
      $region70: #{forward_mocov2.1} parent=59 // pred_check_branch
        %1873 = sbr.rel (%p1871) target = $region72
      $region71: #{forward_mocov2.1} parent=59 // pred_region
        _
      $region72: #{forward_mocov2.1} parent=59 // pred_fallthru
        _
      // Predicated region
      $region73: #{forward_mocov2.1} parent=59 // pred_check
        %p1874 = pneg %p339
      $region74: #{forward_mocov2.1} parent=59 // pred_check_branch
        %1876 = sbr.rel (%p1874) target = $region76
      $region75: #{forward_mocov2.1} parent=59 // pred_region
        _
      $region76: #{forward_mocov2.1} parent=59 // pred_fallthru
        _
    $region60: #{forward_mocov2.1} parent=5 // pred_fallthru
      _
    %p1877 = scmp.le.s32.totalorder 2, %s19
    // Predicated region
    $region77: #{forward_mocov2.1} parent=5 // pred_check
      %p1878 = pneg %p1877
    $region78: #{forward_mocov2.1} parent=5 // pred_check_branch
      %1880 = sbr.rel (%p1878) target = $region80
    $region79: #{forward_mocov2.1} parent=5 // pred_region
      %s1881 = ssub.s32 %s19, 2
      // Predicated region
      $region81: #{forward_mocov2.1} parent=79 // pred_check
        %p1882 = pneg %p293
      $region82: #{forward_mocov2.1} parent=79 // pred_check_branch
        %1884 = sbr.rel (%p1882) target = $region84
      $region83: #{forward_mocov2.1} parent=79 // pred_region
        %p1885 = scmp.lt.s32.totalorder %s25, 1
        %s1886 = scalar_select %p1885, %s25, 1
        %s1887 = smul.addr %s1886, 8
        %s1888 = scalar_lea.vmem %s10, %s1887
      $region84: #{forward_mocov2.1} parent=79 // pred_fallthru
        _
      // Predicated region
      $region85: #{forward_mocov2.1} parent=79 // pred_check
        %p1889 = pneg %p319
      $region86: #{forward_mocov2.1} parent=79 // pred_check_branch
        %1891 = sbr.rel (%p1889) target = $region88
      $region87: #{forward_mocov2.1} parent=79 // pred_region
        %p1892 = scmp.lt.s32.totalorder %s25, 1
        %s1893 = scalar_select %p1892, %s25, 1
        %s1894 = smul.addr %s1893, 8
        %s1895 = smul.addr %s1894, 8
        %s1896 = scalar_lea.vmem %s11, %s1895
      $region88: #{forward_mocov2.1} parent=79 // pred_fallthru
        _
      // Predicated region
      $region89: #{forward_mocov2.1} parent=79 // pred_check
        %p1897 = pneg %p345
      $region90: #{forward_mocov2.1} parent=79 // pred_check_branch
        %1899 = sbr.rel (%p1897) target = $region92
      $region91: #{forward_mocov2.1} parent=79 // pred_region
        %p1900 = scmp.lt.s32.totalorder %s25, 1
        %s1901 = scalar_select %p1900, %s25, 1
        %s1902 = smul.addr %s1901, 2
        %s1903 = smul.addr %s1902, 8
        %s1904 = scalar_lea.vmem %s12, %s1903
      $region92: #{forward_mocov2.1} parent=79 // pred_fallthru
        _
    $region80: #{forward_mocov2.1} parent=5 // pred_fallthru
      _
  $region6: #{forward_mocov2.1} parent=0 // loop_footer
    %s23 = sadd.s32 1, %s19
  $region7: #{forward_mocov2.1} parent=0 // loop_footer_branch
    %18 = sbr.rel target = $region3
  $region8: #{forward_mocov2.1} parent=0 // loop_exit
    _

</llo_original>
